<compile_context>
chip_gen: v7x
topology: tpu7x:2x2x1
jax: 0.10.0
libtpu: 0.0.40
codegen_flags: <defaults>
</compile_context>

<pallas_src>
import random
import numpy as np
import jax
import jax.numpy as jnp
from jax.experimental import pallas as pl
from jax.experimental.pallas import tpu as pltpu


def seq2seq_kernel(tf_ref,                        # SMEM (T_out,) f32 teacher-forcing mask
                   x_ref, tgt_ref,                # VMEM (T_in,B,1), (T_out,B,1)
                   ewih_ref, ewhh_ref, eb_ref,    # encoder: (1,4H), (H,4H), (1,4H)
                   dwih_ref, dwhh_ref, db_ref,    # decoder: (1,4H), (H,4H), (1,4H)
                   lw_ref, lb_ref,                # linear:  (1,H), (1,1)
                   out_ref):                      # VMEM (B, T_out)
    T_in, B, _ = x_ref.shape
    T_out = out_ref.shape[1]
    H = ewhh_ref.shape[0]

    # Hoist weight loads out of the loops.
    ewhh = ewhh_ref[...]
    dwih = dwih_ref[...]
    dwhh = dwhh_ref[...]
    db = db_ref[...]
    lw = lw_ref[...]
    lb = lb_ref[...]

    # Encoder input projection hoisted off the recurrence: one vectorized
    # broadcast-mul over all timesteps (input_size == 1).
    xproj = x_ref[...] * ewih_ref[...] + eb_ref[...]          # (T_in, B, 4H)

    def split_act(gates):                                     # gates: (B, 4H)
        i = jax.nn.sigmoid(gates[:, 0 * H:1 * H])
        f = jax.nn.sigmoid(gates[:, 1 * H:2 * H])
        g = jnp.tanh(gates[:, 2 * H:3 * H])
        o = jax.nn.sigmoid(gates[:, 3 * H:4 * H])
        return i, f, g, o

    h = jnp.zeros((B, H), jnp.float32)
    c = jnp.zeros((B, H), jnp.float32)

    # ----- encoder: fully unrolled, state carried in registers -----
    for t in range(T_in):
        gates = xproj[t] + jnp.dot(h, ewhh, preferred_element_type=jnp.float32)
        i, f, g, o = split_act(gates)
        c = f * c + i * g
        h = o * jnp.tanh(c)

    # decoder seed = last input timestep
    dec_in = x_ref[T_in - 1]                                  # (B, 1)

    # ----- decoder: autoregressive, fully unrolled, optional teacher forcing -----
    ys = []
    for t in range(T_out):
        gates = (dec_in * dwih
                 + jnp.dot(h, dwhh, preferred_element_type=jnp.float32)
                 + db)                                        # (B, 4H) fused gates
        i, f, g, o = split_act(gates)
        c = f * c + i * g
        h = o * jnp.tanh(c)
        # Linear(hidden_size -> 1): lane reduce (cheaper than an MXU pass for width 1)
        y = jnp.sum(h * lw, axis=-1, keepdims=True) + lb      # (B, 1)
        ys.append(y)
        m = tf_ref[t]             # 1.0 -> teacher forced, 0.0 -> autoregressive
        dec_in = m * tgt_ref[t] + (1.0 - m) * y

    # Single lane-dense store (no per-step masked stores into a dim-1 axis).
    out_ref[...] = jnp.concatenate(ys, axis=1)                # (B, T_out)


def lstm_encoder_decoder_forward(inputs, targets, tf_mask, params):
    """inputs: (B, T_in, 1), targets: (B, T_out, 1), tf_mask: (T_out,) float32."""
    B, T_in, I = inputs.shape
    T_out = targets.shape[1]

    x_tm = jnp.transpose(inputs, (1, 0, 2))     # (T_in, B, 1)
    tgt_tm = jnp.transpose(targets, (1, 0, 2))  # (T_out, B, 1)

    out_bt = pl.pallas_call(
        seq2seq_kernel,
        out_shape=jax.ShapeDtypeStruct((B, T_out), jnp.float32),
        in_specs=[pl.BlockSpec(memory_space=pltpu.MemorySpace.SMEM)]
                 + [pl.BlockSpec(memory_space=pltpu.MemorySpace.VMEM)] * 10,
        out_specs=pl.BlockSpec(memory_space=pltpu.MemorySpace.VMEM),
    )(tf_mask, x_tm, tgt_tm,
      params["enc_wih"], params["enc_whh"], params["enc_b"],
      params["dec_wih"], params["dec_whh"], params["dec_b"],
      params["lin_w"], params["lin_b"])

    return out_bt[:, :, None]                   # (B, T_out, 1)


def init_params(key, input_size, hidden_size):
    """Deterministic init mimicking PyTorch's uniform(-1/sqrt(H), 1/sqrt(H)).

    LSTM weights are stored pre-flattened for the fused gate matmul:
      wih: (I, 4H), whh: (H, 4H), b: (1, 4H), columns ordered (i, f, g, o)
      exactly as in PyTorch's (4H, *) row packing (transpose preserves order).
    """
    k = 1.0 / np.sqrt(hidden_size)
    keys = jax.random.split(key, 10)

    def u(kk, shape):
        return jax.random.uniform(kk, shape, jnp.float32, -k, k)

    e_wih = u(keys[0], (4 * hidden_size, input_size))
    e_whh = u(keys[1], (4 * hidden_size, hidden_size))
    e_bih = u(keys[2], (4 * hidden_size,))
    e_bhh = u(keys[3], (4 * hidden_size,))
    d_wih = u(keys[4], (4 * hidden_size, input_size))
    d_whh = u(keys[5], (4 * hidden_size, hidden_size))
    d_bih = u(keys[6], (4 * hidden_size,))
    d_bhh = u(keys[7], (4 * hidden_size,))
    l_w = u(keys[8], (input_size, hidden_size))   # nn.Linear weight (out, in)
    l_b = u(keys[9], (input_size,))

    return dict(
        enc_wih=e_wih.T,                                        # (I, 4H)
        enc_whh=e_whh.T,                                        # (H, 4H)
        enc_b=(e_bih + e_bhh).reshape(1, 4 * hidden_size),      # (1, 4H)
        dec_wih=d_wih.T,
        dec_whh=d_whh.T,
        dec_b=(d_bih + d_bhh).reshape(1, 4 * hidden_size),
        lin_w=l_w,                                              # (1, H)
        lin_b=l_b.reshape(1, 1),                                # (1, 1)
    )


def ref_forward(inputs, targets, tf_mask, params):
    """Pure-JAX reference of the PyTorch forward (for correctness check)."""
    B, T_in, I = inputs.shape
    T_out = targets.shape[1]
    H = params["enc_whh"].shape[0]

    def cell(x_t, h, c, wih, whh, b):
        gates = x_t @ wih + h @ whh + b                 # (B, 4H), gate order i,f,g,o
        i = jax.nn.sigmoid(gates[:, :H])
        f = jax.nn.sigmoid(gates[:, H:2 * H])
        g = jnp.tanh(gates[:, 2 * H:3 * H])
        o = jax.nn.sigmoid(gates[:, 3 * H:])
        c = f * c + i * g
        h = o * jnp.tanh(c)
        return h, c

    h = jnp.zeros((B, H), jnp.float32)
    c = jnp.zeros((B, H), jnp.float32)
    for t in range(T_in):
        h, c = cell(inputs[:, t, :], h, c,
                    params["enc_wih"], params["enc_whh"], params["enc_b"])
    dec_in = inputs[:, -1, :]
    outs = []
    for t in range(T_out):
        h, c = cell(dec_in, h, c,
                    params["dec_wih"], params["dec_whh"], params["dec_b"])
        y = h @ params["lin_w"].T + params["lin_b"]
        outs.append(y)
        dec_in = jnp.where(tf_mask[t] != 0.0, targets[:, t, :], y)
    return jnp.stack(outs, axis=1)


if __name__ == "__main__":
    B, T_IN, T_OUT, INPUT_SIZE, HIDDEN = 2, 8, 4, 1, 32
    teacher_forcing_ratio = 0.5

    key = jax.random.PRNGKey(0)
    kp, kx, kt = jax.random.split(key, 3)
    params = init_params(kp, INPUT_SIZE, HIDDEN)
    inputs = jax.random.normal(kx, (B, T_IN, INPUT_SIZE), jnp.float32)
    targets = jax.random.normal(kt, (B, T_OUT, INPUT_SIZE), jnp.float32)

    # PyTorch uses random.random() < ratio per step; reproduce deterministically
    # with a seeded Python RNG, passed to the kernel as a float mask in SMEM.
    rng = random.Random(0)
    tf_mask = jnp.array(
        [1.0 if rng.random() < teacher_forcing_ratio else 0.0 for _ in range(T_OUT)],
        dtype=jnp.float32)

    out = lstm_encoder_decoder_forward(inputs, targets, tf_mask, params)
    out = jax.block_until_ready(out)

    ref = ref_forward(inputs, targets, tf_mask, params)
    np.testing.assert_allclose(np.asarray(out), np.asarray(ref),
                               atol=1e-5, rtol=1e-5)
    print("KERNEL_OK")
</pallas_src>

<mosaic_0001>
module attributes {stable_mosaic.version = 11 : i64} {
  func.func @seq2seq_kernel(%arg0: memref<4xf32, #tpu.memory_space<smem>>, %arg1: memref<8x2x1xf32, #tpu.memory_space<vmem>>, %arg2: memref<4x2x1xf32, #tpu.memory_space<vmem>>, %arg3: memref<1x128xf32, #tpu.memory_space<vmem>>, %arg4: memref<32x128xf32, #tpu.memory_space<vmem>>, %arg5: memref<1x128xf32, #tpu.memory_space<vmem>>, %arg6: memref<1x128xf32, #tpu.memory_space<vmem>>, %arg7: memref<32x128xf32, #tpu.memory_space<vmem>>, %arg8: memref<1x128xf32, #tpu.memory_space<vmem>>, %arg9: memref<1x32xf32, #tpu.memory_space<vmem>>, %arg10: memref<1x1xf32, #tpu.memory_space<vmem>>, %arg11: memref<2x4xf32, #tpu.memory_space<vmem>>) attributes {dimension_semantics = [], scalar_prefetch = 0 : i64, scratch_operands = 0 : i64, tpu.core_type = #tpu.core_type<tc>} {
    %c0 = arith.constant 0 : index
    %c0_0 = arith.constant 0 : index
    %0 = vector.load %arg4[%c0, %c0_0] : memref<32x128xf32, #tpu.memory_space<vmem>>, vector<32x128xf32>
    %c0_1 = arith.constant 0 : index
    %c0_2 = arith.constant 0 : index
    %1 = vector.load %arg6[%c0_1, %c0_2] : memref<1x128xf32, #tpu.memory_space<vmem>>, vector<1x128xf32>
    %c0_3 = arith.constant 0 : index
    %c0_4 = arith.constant 0 : index
    %2 = vector.load %arg7[%c0_3, %c0_4] : memref<32x128xf32, #tpu.memory_space<vmem>>, vector<32x128xf32>
    %c0_5 = arith.constant 0 : index
    %c0_6 = arith.constant 0 : index
    %3 = vector.load %arg8[%c0_5, %c0_6] : memref<1x128xf32, #tpu.memory_space<vmem>>, vector<1x128xf32>
    %c0_7 = arith.constant 0 : index
    %c0_8 = arith.constant 0 : index
    %4 = vector.load %arg9[%c0_7, %c0_8] : memref<1x32xf32, #tpu.memory_space<vmem>>, vector<1x32xf32>
    %c0_9 = arith.constant 0 : index
    %c0_10 = arith.constant 0 : index
    %5 = vector.load %arg10[%c0_9, %c0_10] : memref<1x1xf32, #tpu.memory_space<vmem>>, vector<1x1xf32>
    %c0_11 = arith.constant 0 : index
    %c0_12 = arith.constant 0 : index
    %c0_13 = arith.constant 0 : index
    %6 = vector.load %arg1[%c0_11, %c0_12, %c0_13] : memref<8x2x1xf32, #tpu.memory_space<vmem>>, vector<8x2x1xf32>
    %c0_14 = arith.constant 0 : index
    %c0_15 = arith.constant 0 : index
    %7 = vector.load %arg3[%c0_14, %c0_15] : memref<1x128xf32, #tpu.memory_space<vmem>>, vector<1x128xf32>
    %8 = vector.shape_cast %7 : vector<1x128xf32> to vector<1x1x128xf32>
    %9 = vector.broadcast %6 : vector<8x2x1xf32> to vector<8x2x128xf32>
    %10 = vector.broadcast %8 : vector<1x1x128xf32> to vector<8x2x128xf32>
    %11 = arith.mulf %9, %10 : vector<8x2x128xf32>
    %c0_16 = arith.constant 0 : index
    %c0_17 = arith.constant 0 : index
    %12 = vector.load %arg5[%c0_16, %c0_17] : memref<1x128xf32, #tpu.memory_space<vmem>>, vector<1x128xf32>
    %13 = vector.shape_cast %12 : vector<1x128xf32> to vector<1x1x128xf32>
    %14 = vector.broadcast %13 : vector<1x1x128xf32> to vector<8x2x128xf32>
    %15 = arith.addf %11, %14 : vector<8x2x128xf32>
    %cst = arith.constant 0.000000e+00 : f32
    %16 = vector.broadcast %cst : f32 to vector<2x32xf32>
    %cst_18 = arith.constant 0.000000e+00 : f32
    %17 = vector.broadcast %cst_18 : f32 to vector<2x32xf32>
    %18 = vector.extract_strided_slice %15 {offsets = [0, 0, 0], sizes = [1, 2, 128], strides = [1, 1, 1]} : vector<8x2x128xf32> to vector<1x2x128xf32>
    %19 = vector.shape_cast %18 : vector<1x2x128xf32> to vector<2x128xf32>
    %cst_19 = arith.constant dense<0.000000e+00> : vector<2x128xf32>
    %20 = tpu.matmul %16, %0, %cst_19 {dimension_numbers = #tpu.dot_dimension_numbers<[1], [0], [0], [1], [0, 0, 1, 1], [], []>} : vector<2x32xf32>, vector<32x128xf32>, vector<2x128xf32> -> vector<2x128xf32>
    %21 = arith.addf %19, %20 : vector<2x128xf32>
    %22 = vector.extract_strided_slice %21 {offsets = [0, 0], sizes = [2, 32], strides = [1, 1]} : vector<2x128xf32> to vector<2x32xf32>
    %23 = arith.negf %22 : vector<2x32xf32>
    %24 = math.exp %23 : vector<2x32xf32>
    %cst_20 = arith.constant 1.000000e+00 : f32
    %25 = vector.broadcast %cst_20 : f32 to vector<2x32xf32>
    %26 = arith.addf %25, %24 : vector<2x32xf32>
    %27 = arith.divf %25, %26 : vector<2x32xf32>
    %28 = vector.extract_strided_slice %21 {offsets = [0, 32], sizes = [2, 32], strides = [1, 1]} : vector<2x128xf32> to vector<2x32xf32>
    %29 = arith.negf %28 : vector<2x32xf32>
    %30 = math.exp %29 : vector<2x32xf32>
    %cst_21 = arith.constant 1.000000e+00 : f32
    %31 = vector.broadcast %cst_21 : f32 to vector<2x32xf32>
    %32 = arith.addf %31, %30 : vector<2x32xf32>
    %33 = arith.divf %31, %32 : vector<2x32xf32>
    %34 = vector.extract_strided_slice %21 {offsets = [0, 64], sizes = [2, 32], strides = [1, 1]} : vector<2x128xf32> to vector<2x32xf32>
    %35 = math.tanh %34 : vector<2x32xf32>
    %36 = vector.extract_strided_slice %21 {offsets = [0, 96], sizes = [2, 32], strides = [1, 1]} : vector<2x128xf32> to vector<2x32xf32>
    %37 = arith.negf %36 : vector<2x32xf32>
    %38 = math.exp %37 : vector<2x32xf32>
    %cst_22 = arith.constant 1.000000e+00 : f32
    %39 = vector.broadcast %cst_22 : f32 to vector<2x32xf32>
    %40 = arith.addf %39, %38 : vector<2x32xf32>
    %41 = arith.divf %39, %40 : vector<2x32xf32>
    %42 = arith.mulf %33, %17 : vector<2x32xf32>
    %43 = arith.mulf %27, %35 : vector<2x32xf32>
    %44 = arith.addf %42, %43 : vector<2x32xf32>
    %45 = math.tanh %44 : vector<2x32xf32>
    %46 = arith.mulf %41, %45 : vector<2x32xf32>
    %47 = vector.extract_strided_slice %15 {offsets = [1, 0, 0], sizes = [1, 2, 128], strides = [1, 1, 1]} : vector<8x2x128xf32> to vector<1x2x128xf32>
    %48 = vector.shape_cast %47 : vector<1x2x128xf32> to vector<2x128xf32>
    %cst_23 = arith.constant dense<0.000000e+00> : vector<2x128xf32>
    %49 = tpu.matmul %46, %0, %cst_23 {dimension_numbers = #tpu.dot_dimension_numbers<[1], [0], [0], [1], [0, 0, 1, 1], [], []>} : vector<2x32xf32>, vector<32x128xf32>, vector<2x128xf32> -> vector<2x128xf32>
    %50 = arith.addf %48, %49 : vector<2x128xf32>
    %51 = vector.extract_strided_slice %50 {offsets = [0, 0], sizes = [2, 32], strides = [1, 1]} : vector<2x128xf32> to vector<2x32xf32>
    %52 = arith.negf %51 : vector<2x32xf32>
    %53 = math.exp %52 : vector<2x32xf32>
    %cst_24 = arith.constant 1.000000e+00 : f32
    %54 = vector.broadcast %cst_24 : f32 to vector<2x32xf32>
    %55 = arith.addf %54, %53 : vector<2x32xf32>
    %56 = arith.divf %54, %55 : vector<2x32xf32>
    %57 = vector.extract_strided_slice %50 {offsets = [0, 32], sizes = [2, 32], strides = [1, 1]} : vector<2x128xf32> to vector<2x32xf32>
    %58 = arith.negf %57 : vector<2x32xf32>
    %59 = math.exp %58 : vector<2x32xf32>
    %cst_25 = arith.constant 1.000000e+00 : f32
    %60 = vector.broadcast %cst_25 : f32 to vector<2x32xf32>
    %61 = arith.addf %60, %59 : vector<2x32xf32>
    %62 = arith.divf %60, %61 : vector<2x32xf32>
    %63 = vector.extract_strided_slice %50 {offsets = [0, 64], sizes = [2, 32], strides = [1, 1]} : vector<2x128xf32> to vector<2x32xf32>
    %64 = math.tanh %63 : vector<2x32xf32>
    %65 = vector.extract_strided_slice %50 {offsets = [0, 96], sizes = [2, 32], strides = [1, 1]} : vector<2x128xf32> to vector<2x32xf32>
    %66 = arith.negf %65 : vector<2x32xf32>
    %67 = math.exp %66 : vector<2x32xf32>
    %cst_26 = arith.constant 1.000000e+00 : f32
    %68 = vector.broadcast %cst_26 : f32 to vector<2x32xf32>
    %69 = arith.addf %68, %67 : vector<2x32xf32>
    %70 = arith.divf %68, %69 : vector<2x32xf32>
    %71 = arith.mulf %62, %44 : vector<2x32xf32>
    %72 = arith.mulf %56, %64 : vector<2x32xf32>
    %73 = arith.addf %71, %72 : vector<2x32xf32>
    %74 = math.tanh %73 : vector<2x32xf32>
    %75 = arith.mulf %70, %74 : vector<2x32xf32>
    %76 = vector.extract_strided_slice %15 {offsets = [2, 0, 0], sizes = [1, 2, 128], strides = [1, 1, 1]} : vector<8x2x128xf32> to vector<1x2x128xf32>
    %77 = vector.shape_cast %76 : vector<1x2x128xf32> to vector<2x128xf32>
    %cst_27 = arith.constant dense<0.000000e+00> : vector<2x128xf32>
    %78 = tpu.matmul %75, %0, %cst_27 {dimension_numbers = #tpu.dot_dimension_numbers<[1], [0], [0], [1], [0, 0, 1, 1], [], []>} : vector<2x32xf32>, vector<32x128xf32>, vector<2x128xf32> -> vector<2x128xf32>
    %79 = arith.addf %77, %78 : vector<2x128xf32>
    %80 = vector.extract_strided_slice %79 {offsets = [0, 0], sizes = [2, 32], strides = [1, 1]} : vector<2x128xf32> to vector<2x32xf32>
    %81 = arith.negf %80 : vector<2x32xf32>
    %82 = math.exp %81 : vector<2x32xf32>
    %cst_28 = arith.constant 1.000000e+00 : f32
    %83 = vector.broadcast %cst_28 : f32 to vector<2x32xf32>
    %84 = arith.addf %83, %82 : vector<2x32xf32>
    %85 = arith.divf %83, %84 : vector<2x32xf32>
    %86 = vector.extract_strided_slice %79 {offsets = [0, 32], sizes = [2, 32], strides = [1, 1]} : vector<2x128xf32> to vector<2x32xf32>
    %87 = arith.negf %86 : vector<2x32xf32>
    %88 = math.exp %87 : vector<2x32xf32>
    %cst_29 = arith.constant 1.000000e+00 : f32
    %89 = vector.broadcast %cst_29 : f32 to vector<2x32xf32>
    %90 = arith.addf %89, %88 : vector<2x32xf32>
    %91 = arith.divf %89, %90 : vector<2x32xf32>
    %92 = vector.extract_strided_slice %79 {offsets = [0, 64], sizes = [2, 32], strides = [1, 1]} : vector<2x128xf32> to vector<2x32xf32>
    %93 = math.tanh %92 : vector<2x32xf32>
    %94 = vector.extract_strided_slice %79 {offsets = [0, 96], sizes = [2, 32], strides = [1, 1]} : vector<2x128xf32> to vector<2x32xf32>
    %95 = arith.negf %94 : vector<2x32xf32>
    %96 = math.exp %95 : vector<2x32xf32>
    %cst_30 = arith.constant 1.000000e+00 : f32
    %97 = vector.broadcast %cst_30 : f32 to vector<2x32xf32>
    %98 = arith.addf %97, %96 : vector<2x32xf32>
    %99 = arith.divf %97, %98 : vector<2x32xf32>
    %100 = arith.mulf %91, %73 : vector<2x32xf32>
    %101 = arith.mulf %85, %93 : vector<2x32xf32>
    %102 = arith.addf %100, %101 : vector<2x32xf32>
    %103 = math.tanh %102 : vector<2x32xf32>
    %104 = arith.mulf %99, %103 : vector<2x32xf32>
    %105 = vector.extract_strided_slice %15 {offsets = [3, 0, 0], sizes = [1, 2, 128], strides = [1, 1, 1]} : vector<8x2x128xf32> to vector<1x2x128xf32>
    %106 = vector.shape_cast %105 : vector<1x2x128xf32> to vector<2x128xf32>
    %cst_31 = arith.constant dense<0.000000e+00> : vector<2x128xf32>
    %107 = tpu.matmul %104, %0, %cst_31 {dimension_numbers = #tpu.dot_dimension_numbers<[1], [0], [0], [1], [0, 0, 1, 1], [], []>} : vector<2x32xf32>, vector<32x128xf32>, vector<2x128xf32> -> vector<2x128xf32>
    %108 = arith.addf %106, %107 : vector<2x128xf32>
    %109 = vector.extract_strided_slice %108 {offsets = [0, 0], sizes = [2, 32], strides = [1, 1]} : vector<2x128xf32> to vector<2x32xf32>
    %110 = arith.negf %109 : vector<2x32xf32>
    %111 = math.exp %110 : vector<2x32xf32>
    %cst_32 = arith.constant 1.000000e+00 : f32
    %112 = vector.broadcast %cst_32 : f32 to vector<2x32xf32>
    %113 = arith.addf %112, %111 : vector<2x32xf32>
    %114 = arith.divf %112, %113 : vector<2x32xf32>
    %115 = vector.extract_strided_slice %108 {offsets = [0, 32], sizes = [2, 32], strides = [1, 1]} : vector<2x128xf32> to vector<2x32xf32>
    %116 = arith.negf %115 : vector<2x32xf32>
    %117 = math.exp %116 : vector<2x32xf32>
    %cst_33 = arith.constant 1.000000e+00 : f32
    %118 = vector.broadcast %cst_33 : f32 to vector<2x32xf32>
    %119 = arith.addf %118, %117 : vector<2x32xf32>
    %120 = arith.divf %118, %119 : vector<2x32xf32>
    %121 = vector.extract_strided_slice %108 {offsets = [0, 64], sizes = [2, 32], strides = [1, 1]} : vector<2x128xf32> to vector<2x32xf32>
    %122 = math.tanh %121 : vector<2x32xf32>
    %123 = vector.extract_strided_slice %108 {offsets = [0, 96], sizes = [2, 32], strides = [1, 1]} : vector<2x128xf32> to vector<2x32xf32>
    %124 = arith.negf %123 : vector<2x32xf32>
    %125 = math.exp %124 : vector<2x32xf32>
    %cst_34 = arith.constant 1.000000e+00 : f32
    %126 = vector.broadcast %cst_34 : f32 to vector<2x32xf32>
    %127 = arith.addf %126, %125 : vector<2x32xf32>
    %128 = arith.divf %126, %127 : vector<2x32xf32>
    %129 = arith.mulf %120, %102 : vector<2x32xf32>
    %130 = arith.mulf %114, %122 : vector<2x32xf32>
    %131 = arith.addf %129, %130 : vector<2x32xf32>
    %132 = math.tanh %131 : vector<2x32xf32>
    %133 = arith.mulf %128, %132 : vector<2x32xf32>
    %134 = vector.extract_strided_slice %15 {offsets = [4, 0, 0], sizes = [1, 2, 128], strides = [1, 1, 1]} : vector<8x2x128xf32> to vector<1x2x128xf32>
    %135 = vector.shape_cast %134 : vector<1x2x128xf32> to vector<2x128xf32>
    %cst_35 = arith.constant dense<0.000000e+00> : vector<2x128xf32>
    %136 = tpu.matmul %133, %0, %cst_35 {dimension_numbers = #tpu.dot_dimension_numbers<[1], [0], [0], [1], [0, 0, 1, 1], [], []>} : vector<2x32xf32>, vector<32x128xf32>, vector<2x128xf32> -> vector<2x128xf32>
    %137 = arith.addf %135, %136 : vector<2x128xf32>
    %138 = vector.extract_strided_slice %137 {offsets = [0, 0], sizes = [2, 32], strides = [1, 1]} : vector<2x128xf32> to vector<2x32xf32>
    %139 = arith.negf %138 : vector<2x32xf32>
    %140 = math.exp %139 : vector<2x32xf32>
    %cst_36 = arith.constant 1.000000e+00 : f32
    %141 = vector.broadcast %cst_36 : f32 to vector<2x32xf32>
    %142 = arith.addf %141, %140 : vector<2x32xf32>
    %143 = arith.divf %141, %142 : vector<2x32xf32>
    %144 = vector.extract_strided_slice %137 {offsets = [0, 32], sizes = [2, 32], strides = [1, 1]} : vector<2x128xf32> to vector<2x32xf32>
    %145 = arith.negf %144 : vector<2x32xf32>
    %146 = math.exp %145 : vector<2x32xf32>
    %cst_37 = arith.constant 1.000000e+00 : f32
    %147 = vector.broadcast %cst_37 : f32 to vector<2x32xf32>
    %148 = arith.addf %147, %146 : vector<2x32xf32>
    %149 = arith.divf %147, %148 : vector<2x32xf32>
    %150 = vector.extract_strided_slice %137 {offsets = [0, 64], sizes = [2, 32], strides = [1, 1]} : vector<2x128xf32> to vector<2x32xf32>
    %151 = math.tanh %150 : vector<2x32xf32>
    %152 = vector.extract_strided_slice %137 {offsets = [0, 96], sizes = [2, 32], strides = [1, 1]} : vector<2x128xf32> to vector<2x32xf32>
    %153 = arith.negf %152 : vector<2x32xf32>
    %154 = math.exp %153 : vector<2x32xf32>
    %cst_38 = arith.constant 1.000000e+00 : f32
    %155 = vector.broadcast %cst_38 : f32 to vector<2x32xf32>
    %156 = arith.addf %155, %154 : vector<2x32xf32>
    %157 = arith.divf %155, %156 : vector<2x32xf32>
    %158 = arith.mulf %149, %131 : vector<2x32xf32>
    %159 = arith.mulf %143, %151 : vector<2x32xf32>
    %160 = arith.addf %158, %159 : vector<2x32xf32>
    %161 = math.tanh %160 : vector<2x32xf32>
    %162 = arith.mulf %157, %161 : vector<2x32xf32>
    %163 = vector.extract_strided_slice %15 {offsets = [5, 0, 0], sizes = [1, 2, 128], strides = [1, 1, 1]} : vector<8x2x128xf32> to vector<1x2x128xf32>
    %164 = vector.shape_cast %163 : vector<1x2x128xf32> to vector<2x128xf32>
    %cst_39 = arith.constant dense<0.000000e+00> : vector<2x128xf32>
    %165 = tpu.matmul %162, %0, %cst_39 {dimension_numbers = #tpu.dot_dimension_numbers<[1], [0], [0], [1], [0, 0, 1, 1], [], []>} : vector<2x32xf32>, vector<32x128xf32>, vector<2x128xf32> -> vector<2x128xf32>
    %166 = arith.addf %164, %165 : vector<2x128xf32>
    %167 = vector.extract_strided_slice %166 {offsets = [0, 0], sizes = [2, 32], strides = [1, 1]} : vector<2x128xf32> to vector<2x32xf32>
    %168 = arith.negf %167 : vector<2x32xf32>
    %169 = math.exp %168 : vector<2x32xf32>
    %cst_40 = arith.constant 1.000000e+00 : f32
    %170 = vector.broadcast %cst_40 : f32 to vector<2x32xf32>
    %171 = arith.addf %170, %169 : vector<2x32xf32>
    %172 = arith.divf %170, %171 : vector<2x32xf32>
    %173 = vector.extract_strided_slice %166 {offsets = [0, 32], sizes = [2, 32], strides = [1, 1]} : vector<2x128xf32> to vector<2x32xf32>
    %174 = arith.negf %173 : vector<2x32xf32>
    %175 = math.exp %174 : vector<2x32xf32>
    %cst_41 = arith.constant 1.000000e+00 : f32
    %176 = vector.broadcast %cst_41 : f32 to vector<2x32xf32>
    %177 = arith.addf %176, %175 : vector<2x32xf32>
    %178 = arith.divf %176, %177 : vector<2x32xf32>
    %179 = vector.extract_strided_slice %166 {offsets = [0, 64], sizes = [2, 32], strides = [1, 1]} : vector<2x128xf32> to vector<2x32xf32>
    %180 = math.tanh %179 : vector<2x32xf32>
    %181 = vector.extract_strided_slice %166 {offsets = [0, 96], sizes = [2, 32], strides = [1, 1]} : vector<2x128xf32> to vector<2x32xf32>
    %182 = arith.negf %181 : vector<2x32xf32>
    %183 = math.exp %182 : vector<2x32xf32>
    %cst_42 = arith.constant 1.000000e+00 : f32
    %184 = vector.broadcast %cst_42 : f32 to vector<2x32xf32>
    %185 = arith.addf %184, %183 : vector<2x32xf32>
    %186 = arith.divf %184, %185 : vector<2x32xf32>
    %187 = arith.mulf %178, %160 : vector<2x32xf32>
    %188 = arith.mulf %172, %180 : vector<2x32xf32>
    %189 = arith.addf %187, %188 : vector<2x32xf32>
    %190 = math.tanh %189 : vector<2x32xf32>
    %191 = arith.mulf %186, %190 : vector<2x32xf32>
    %192 = vector.extract_strided_slice %15 {offsets = [6, 0, 0], sizes = [1, 2, 128], strides = [1, 1, 1]} : vector<8x2x128xf32> to vector<1x2x128xf32>
    %193 = vector.shape_cast %192 : vector<1x2x128xf32> to vector<2x128xf32>
    %cst_43 = arith.constant dense<0.000000e+00> : vector<2x128xf32>
    %194 = tpu.matmul %191, %0, %cst_43 {dimension_numbers = #tpu.dot_dimension_numbers<[1], [0], [0], [1], [0, 0, 1, 1], [], []>} : vector<2x32xf32>, vector<32x128xf32>, vector<2x128xf32> -> vector<2x128xf32>
    %195 = arith.addf %193, %194 : vector<2x128xf32>
    %196 = vector.extract_strided_slice %195 {offsets = [0, 0], sizes = [2, 32], strides = [1, 1]} : vector<2x128xf32> to vector<2x32xf32>
    %197 = arith.negf %196 : vector<2x32xf32>
    %198 = math.exp %197 : vector<2x32xf32>
    %cst_44 = arith.constant 1.000000e+00 : f32
    %199 = vector.broadcast %cst_44 : f32 to vector<2x32xf32>
    %200 = arith.addf %199, %198 : vector<2x32xf32>
    %201 = arith.divf %199, %200 : vector<2x32xf32>
    %202 = vector.extract_strided_slice %195 {offsets = [0, 32], sizes = [2, 32], strides = [1, 1]} : vector<2x128xf32> to vector<2x32xf32>
    %203 = arith.negf %202 : vector<2x32xf32>
    %204 = math.exp %203 : vector<2x32xf32>
    %cst_45 = arith.constant 1.000000e+00 : f32
    %205 = vector.broadcast %cst_45 : f32 to vector<2x32xf32>
    %206 = arith.addf %205, %204 : vector<2x32xf32>
    %207 = arith.divf %205, %206 : vector<2x32xf32>
    %208 = vector.extract_strided_slice %195 {offsets = [0, 64], sizes = [2, 32], strides = [1, 1]} : vector<2x128xf32> to vector<2x32xf32>
    %209 = math.tanh %208 : vector<2x32xf32>
    %210 = vector.extract_strided_slice %195 {offsets = [0, 96], sizes = [2, 32], strides = [1, 1]} : vector<2x128xf32> to vector<2x32xf32>
    %211 = arith.negf %210 : vector<2x32xf32>
    %212 = math.exp %211 : vector<2x32xf32>
    %cst_46 = arith.constant 1.000000e+00 : f32
    %213 = vector.broadcast %cst_46 : f32 to vector<2x32xf32>
    %214 = arith.addf %213, %212 : vector<2x32xf32>
    %215 = arith.divf %213, %214 : vector<2x32xf32>
    %216 = arith.mulf %207, %189 : vector<2x32xf32>
    %217 = arith.mulf %201, %209 : vector<2x32xf32>
    %218 = arith.addf %216, %217 : vector<2x32xf32>
    %219 = math.tanh %218 : vector<2x32xf32>
    %220 = arith.mulf %215, %219 : vector<2x32xf32>
    %221 = vector.extract_strided_slice %15 {offsets = [7, 0, 0], sizes = [1, 2, 128], strides = [1, 1, 1]} : vector<8x2x128xf32> to vector<1x2x128xf32>
    %222 = vector.shape_cast %221 : vector<1x2x128xf32> to vector<2x128xf32>
    %cst_47 = arith.constant dense<0.000000e+00> : vector<2x128xf32>
    %223 = tpu.matmul %220, %0, %cst_47 {dimension_numbers = #tpu.dot_dimension_numbers<[1], [0], [0], [1], [0, 0, 1, 1], [], []>} : vector<2x32xf32>, vector<32x128xf32>, vector<2x128xf32> -> vector<2x128xf32>
    %224 = arith.addf %222, %223 : vector<2x128xf32>
    %225 = vector.extract_strided_slice %224 {offsets = [0, 0], sizes = [2, 32], strides = [1, 1]} : vector<2x128xf32> to vector<2x32xf32>
    %226 = arith.negf %225 : vector<2x32xf32>
    %227 = math.exp %226 : vector<2x32xf32>
    %cst_48 = arith.constant 1.000000e+00 : f32
    %228 = vector.broadcast %cst_48 : f32 to vector<2x32xf32>
    %229 = arith.addf %228, %227 : vector<2x32xf32>
    %230 = arith.divf %228, %229 : vector<2x32xf32>
    %231 = vector.extract_strided_slice %224 {offsets = [0, 32], sizes = [2, 32], strides = [1, 1]} : vector<2x128xf32> to vector<2x32xf32>
    %232 = arith.negf %231 : vector<2x32xf32>
    %233 = math.exp %232 : vector<2x32xf32>
    %cst_49 = arith.constant 1.000000e+00 : f32
    %234 = vector.broadcast %cst_49 : f32 to vector<2x32xf32>
    %235 = arith.addf %234, %233 : vector<2x32xf32>
    %236 = arith.divf %234, %235 : vector<2x32xf32>
    %237 = vector.extract_strided_slice %224 {offsets = [0, 64], sizes = [2, 32], strides = [1, 1]} : vector<2x128xf32> to vector<2x32xf32>
    %238 = math.tanh %237 : vector<2x32xf32>
    %239 = vector.extract_strided_slice %224 {offsets = [0, 96], sizes = [2, 32], strides = [1, 1]} : vector<2x128xf32> to vector<2x32xf32>
    %240 = arith.negf %239 : vector<2x32xf32>
    %241 = math.exp %240 : vector<2x32xf32>
    %cst_50 = arith.constant 1.000000e+00 : f32
    %242 = vector.broadcast %cst_50 : f32 to vector<2x32xf32>
    %243 = arith.addf %242, %241 : vector<2x32xf32>
    %244 = arith.divf %242, %243 : vector<2x32xf32>
    %245 = arith.mulf %236, %218 : vector<2x32xf32>
    %246 = arith.mulf %230, %238 : vector<2x32xf32>
    %247 = arith.addf %245, %246 : vector<2x32xf32>
    %248 = math.tanh %247 : vector<2x32xf32>
    %249 = arith.mulf %244, %248 : vector<2x32xf32>
    %c7 = arith.constant 7 : index
    %c0_51 = arith.constant 0 : index
    %c0_52 = arith.constant 0 : index
    %250 = vector.load %arg1[%c7, %c0_51, %c0_52] : memref<8x2x1xf32, #tpu.memory_space<vmem>>, vector<1x2x1xf32>
    %251 = vector.shape_cast %250 : vector<1x2x1xf32> to vector<2x1xf32>
    %252 = vector.broadcast %251 : vector<2x1xf32> to vector<2x128xf32>
    %253 = vector.broadcast %1 : vector<1x128xf32> to vector<2x128xf32>
    %254 = arith.mulf %252, %253 : vector<2x128xf32>
    %cst_53 = arith.constant dense<0.000000e+00> : vector<2x128xf32>
    %255 = tpu.matmul %249, %2, %cst_53 {dimension_numbers = #tpu.dot_dimension_numbers<[1], [0], [0], [1], [0, 0, 1, 1], [], []>} : vector<2x32xf32>, vector<32x128xf32>, vector<2x128xf32> -> vector<2x128xf32>
    %256 = arith.addf %254, %255 : vector<2x128xf32>
    %257 = vector.broadcast %3 : vector<1x128xf32> to vector<2x128xf32>
    %258 = arith.addf %256, %257 : vector<2x128xf32>
    %259 = vector.extract_strided_slice %258 {offsets = [0, 0], sizes = [2, 32], strides = [1, 1]} : vector<2x128xf32> to vector<2x32xf32>
    %260 = arith.negf %259 : vector<2x32xf32>
    %261 = math.exp %260 : vector<2x32xf32>
    %cst_54 = arith.constant 1.000000e+00 : f32
    %262 = vector.broadcast %cst_54 : f32 to vector<2x32xf32>
    %263 = arith.addf %262, %261 : vector<2x32xf32>
    %264 = arith.divf %262, %263 : vector<2x32xf32>
    %265 = vector.extract_strided_slice %258 {offsets = [0, 32], sizes = [2, 32], strides = [1, 1]} : vector<2x128xf32> to vector<2x32xf32>
    %266 = arith.negf %265 : vector<2x32xf32>
    %267 = math.exp %266 : vector<2x32xf32>
    %cst_55 = arith.constant 1.000000e+00 : f32
    %268 = vector.broadcast %cst_55 : f32 to vector<2x32xf32>
    %269 = arith.addf %268, %267 : vector<2x32xf32>
    %270 = arith.divf %268, %269 : vector<2x32xf32>
    %271 = vector.extract_strided_slice %258 {offsets = [0, 64], sizes = [2, 32], strides = [1, 1]} : vector<2x128xf32> to vector<2x32xf32>
    %272 = math.tanh %271 : vector<2x32xf32>
    %273 = vector.extract_strided_slice %258 {offsets = [0, 96], sizes = [2, 32], strides = [1, 1]} : vector<2x128xf32> to vector<2x32xf32>
    %274 = arith.negf %273 : vector<2x32xf32>
    %275 = math.exp %274 : vector<2x32xf32>
    %cst_56 = arith.constant 1.000000e+00 : f32
    %276 = vector.broadcast %cst_56 : f32 to vector<2x32xf32>
    %277 = arith.addf %276, %275 : vector<2x32xf32>
    %278 = arith.divf %276, %277 : vector<2x32xf32>
    %279 = arith.mulf %270, %247 : vector<2x32xf32>
    %280 = arith.mulf %264, %272 : vector<2x32xf32>
    %281 = arith.addf %279, %280 : vector<2x32xf32>
    %282 = math.tanh %281 : vector<2x32xf32>
    %283 = arith.mulf %278, %282 : vector<2x32xf32>
    %284 = vector.broadcast %4 : vector<1x32xf32> to vector<2x32xf32>
    %285 = arith.mulf %283, %284 : vector<2x32xf32>
    %cst_57 = arith.constant dense<0.000000e+00> : vector<2xf32>
    %286 = vector.multi_reduction <add>, %285, %cst_57 [1] : vector<2x32xf32> to vector<2xf32>
    %287 = vector.shape_cast %286 : vector<2xf32> to vector<2x1xf32>
    %288 = vector.broadcast %5 : vector<1x1xf32> to vector<2x1xf32>
    %289 = arith.addf %287, %288 : vector<2x1xf32>
    %c0_58 = arith.constant 0 : index
    %290 = memref.load %arg0[%c0_58] : memref<4xf32, #tpu.memory_space<smem>>
    %c0_59 = arith.constant 0 : index
    %c0_60 = arith.constant 0 : index
    %c0_61 = arith.constant 0 : index
    %291 = vector.load %arg2[%c0_59, %c0_60, %c0_61] : memref<4x2x1xf32, #tpu.memory_space<vmem>>, vector<1x2x1xf32>
    %292 = vector.shape_cast %291 : vector<1x2x1xf32> to vector<2x1xf32>
    %293 = vector.broadcast %290 : f32 to vector<2x1xf32>
    %294 = arith.mulf %293, %292 : vector<2x1xf32>
    %cst_62 = arith.constant 1.000000e+00 : f32
    %295 = arith.subf %cst_62, %290 : f32
    %296 = vector.broadcast %295 : f32 to vector<2x1xf32>
    %297 = arith.mulf %296, %289 : vector<2x1xf32>
    %298 = arith.addf %294, %297 : vector<2x1xf32>
    %299 = vector.broadcast %298 : vector<2x1xf32> to vector<2x128xf32>
    %300 = vector.broadcast %1 : vector<1x128xf32> to vector<2x128xf32>
    %301 = arith.mulf %299, %300 : vector<2x128xf32>
    %cst_63 = arith.constant dense<0.000000e+00> : vector<2x128xf32>
    %302 = tpu.matmul %283, %2, %cst_63 {dimension_numbers = #tpu.dot_dimension_numbers<[1], [0], [0], [1], [0, 0, 1, 1], [], []>} : vector<2x32xf32>, vector<32x128xf32>, vector<2x128xf32> -> vector<2x128xf32>
    %303 = arith.addf %301, %302 : vector<2x128xf32>
    %304 = vector.broadcast %3 : vector<1x128xf32> to vector<2x128xf32>
    %305 = arith.addf %303, %304 : vector<2x128xf32>
    %306 = vector.extract_strided_slice %305 {offsets = [0, 0], sizes = [2, 32], strides = [1, 1]} : vector<2x128xf32> to vector<2x32xf32>
    %307 = arith.negf %306 : vector<2x32xf32>
    %308 = math.exp %307 : vector<2x32xf32>
    %cst_64 = arith.constant 1.000000e+00 : f32
    %309 = vector.broadcast %cst_64 : f32 to vector<2x32xf32>
    %310 = arith.addf %309, %308 : vector<2x32xf32>
    %311 = arith.divf %309, %310 : vector<2x32xf32>
    %312 = vector.extract_strided_slice %305 {offsets = [0, 32], sizes = [2, 32], strides = [1, 1]} : vector<2x128xf32> to vector<2x32xf32>
    %313 = arith.negf %312 : vector<2x32xf32>
    %314 = math.exp %313 : vector<2x32xf32>
    %cst_65 = arith.constant 1.000000e+00 : f32
    %315 = vector.broadcast %cst_65 : f32 to vector<2x32xf32>
    %316 = arith.addf %315, %314 : vector<2x32xf32>
    %317 = arith.divf %315, %316 : vector<2x32xf32>
    %318 = vector.extract_strided_slice %305 {offsets = [0, 64], sizes = [2, 32], strides = [1, 1]} : vector<2x128xf32> to vector<2x32xf32>
    %319 = math.tanh %318 : vector<2x32xf32>
    %320 = vector.extract_strided_slice %305 {offsets = [0, 96], sizes = [2, 32], strides = [1, 1]} : vector<2x128xf32> to vector<2x32xf32>
    %321 = arith.negf %320 : vector<2x32xf32>
    %322 = math.exp %321 : vector<2x32xf32>
    %cst_66 = arith.constant 1.000000e+00 : f32
    %323 = vector.broadcast %cst_66 : f32 to vector<2x32xf32>
    %324 = arith.addf %323, %322 : vector<2x32xf32>
    %325 = arith.divf %323, %324 : vector<2x32xf32>
    %326 = arith.mulf %317, %281 : vector<2x32xf32>
    %327 = arith.mulf %311, %319 : vector<2x32xf32>
    %328 = arith.addf %326, %327 : vector<2x32xf32>
    %329 = math.tanh %328 : vector<2x32xf32>
    %330 = arith.mulf %325, %329 : vector<2x32xf32>
    %331 = vector.broadcast %4 : vector<1x32xf32> to vector<2x32xf32>
    %332 = arith.mulf %330, %331 : vector<2x32xf32>
    %cst_67 = arith.constant dense<0.000000e+00> : vector<2xf32>
    %333 = vector.multi_reduction <add>, %332, %cst_67 [1] : vector<2x32xf32> to vector<2xf32>
    %334 = vector.shape_cast %333 : vector<2xf32> to vector<2x1xf32>
    %335 = vector.broadcast %5 : vector<1x1xf32> to vector<2x1xf32>
    %336 = arith.addf %334, %335 : vector<2x1xf32>
    %c1 = arith.constant 1 : index
    %337 = memref.load %arg0[%c1] : memref<4xf32, #tpu.memory_space<smem>>
    %c1_68 = arith.constant 1 : index
    %c0_69 = arith.constant 0 : index
    %c0_70 = arith.constant 0 : index
    %338 = vector.load %arg2[%c1_68, %c0_69, %c0_70] : memref<4x2x1xf32, #tpu.memory_space<vmem>>, vector<1x2x1xf32>
    %339 = vector.shape_cast %338 : vector<1x2x1xf32> to vector<2x1xf32>
    %340 = vector.broadcast %337 : f32 to vector<2x1xf32>
    %341 = arith.mulf %340, %339 : vector<2x1xf32>
    %cst_71 = arith.constant 1.000000e+00 : f32
    %342 = arith.subf %cst_71, %337 : f32
    %343 = vector.broadcast %342 : f32 to vector<2x1xf32>
    %344 = arith.mulf %343, %336 : vector<2x1xf32>
    %345 = arith.addf %341, %344 : vector<2x1xf32>
    %346 = vector.broadcast %345 : vector<2x1xf32> to vector<2x128xf32>
    %347 = vector.broadcast %1 : vector<1x128xf32> to vector<2x128xf32>
    %348 = arith.mulf %346, %347 : vector<2x128xf32>
    %cst_72 = arith.constant dense<0.000000e+00> : vector<2x128xf32>
    %349 = tpu.matmul %330, %2, %cst_72 {dimension_numbers = #tpu.dot_dimension_numbers<[1], [0], [0], [1], [0, 0, 1, 1], [], []>} : vector<2x32xf32>, vector<32x128xf32>, vector<2x128xf32> -> vector<2x128xf32>
    %350 = arith.addf %348, %349 : vector<2x128xf32>
    %351 = vector.broadcast %3 : vector<1x128xf32> to vector<2x128xf32>
    %352 = arith.addf %350, %351 : vector<2x128xf32>
    %353 = vector.extract_strided_slice %352 {offsets = [0, 0], sizes = [2, 32], strides = [1, 1]} : vector<2x128xf32> to vector<2x32xf32>
    %354 = arith.negf %353 : vector<2x32xf32>
    %355 = math.exp %354 : vector<2x32xf32>
    %cst_73 = arith.constant 1.000000e+00 : f32
    %356 = vector.broadcast %cst_73 : f32 to vector<2x32xf32>
    %357 = arith.addf %356, %355 : vector<2x32xf32>
    %358 = arith.divf %356, %357 : vector<2x32xf32>
    %359 = vector.extract_strided_slice %352 {offsets = [0, 32], sizes = [2, 32], strides = [1, 1]} : vector<2x128xf32> to vector<2x32xf32>
    %360 = arith.negf %359 : vector<2x32xf32>
    %361 = math.exp %360 : vector<2x32xf32>
    %cst_74 = arith.constant 1.000000e+00 : f32
    %362 = vector.broadcast %cst_74 : f32 to vector<2x32xf32>
    %363 = arith.addf %362, %361 : vector<2x32xf32>
    %364 = arith.divf %362, %363 : vector<2x32xf32>
    %365 = vector.extract_strided_slice %352 {offsets = [0, 64], sizes = [2, 32], strides = [1, 1]} : vector<2x128xf32> to vector<2x32xf32>
    %366 = math.tanh %365 : vector<2x32xf32>
    %367 = vector.extract_strided_slice %352 {offsets = [0, 96], sizes = [2, 32], strides = [1, 1]} : vector<2x128xf32> to vector<2x32xf32>
    %368 = arith.negf %367 : vector<2x32xf32>
    %369 = math.exp %368 : vector<2x32xf32>
    %cst_75 = arith.constant 1.000000e+00 : f32
    %370 = vector.broadcast %cst_75 : f32 to vector<2x32xf32>
    %371 = arith.addf %370, %369 : vector<2x32xf32>
    %372 = arith.divf %370, %371 : vector<2x32xf32>
    %373 = arith.mulf %364, %328 : vector<2x32xf32>
    %374 = arith.mulf %358, %366 : vector<2x32xf32>
    %375 = arith.addf %373, %374 : vector<2x32xf32>
    %376 = math.tanh %375 : vector<2x32xf32>
    %377 = arith.mulf %372, %376 : vector<2x32xf32>
    %378 = vector.broadcast %4 : vector<1x32xf32> to vector<2x32xf32>
    %379 = arith.mulf %377, %378 : vector<2x32xf32>
    %cst_76 = arith.constant dense<0.000000e+00> : vector<2xf32>
    %380 = vector.multi_reduction <add>, %379, %cst_76 [1] : vector<2x32xf32> to vector<2xf32>
    %381 = vector.shape_cast %380 : vector<2xf32> to vector<2x1xf32>
    %382 = vector.broadcast %5 : vector<1x1xf32> to vector<2x1xf32>
    %383 = arith.addf %381, %382 : vector<2x1xf32>
    %c2 = arith.constant 2 : index
    %384 = memref.load %arg0[%c2] : memref<4xf32, #tpu.memory_space<smem>>
    %c2_77 = arith.constant 2 : index
    %c0_78 = arith.constant 0 : index
    %c0_79 = arith.constant 0 : index
    %385 = vector.load %arg2[%c2_77, %c0_78, %c0_79] : memref<4x2x1xf32, #tpu.memory_space<vmem>>, vector<1x2x1xf32>
    %386 = vector.shape_cast %385 : vector<1x2x1xf32> to vector<2x1xf32>
    %387 = vector.broadcast %384 : f32 to vector<2x1xf32>
    %388 = arith.mulf %387, %386 : vector<2x1xf32>
    %cst_80 = arith.constant 1.000000e+00 : f32
    %389 = arith.subf %cst_80, %384 : f32
    %390 = vector.broadcast %389 : f32 to vector<2x1xf32>
    %391 = arith.mulf %390, %383 : vector<2x1xf32>
    %392 = arith.addf %388, %391 : vector<2x1xf32>
    %393 = vector.broadcast %392 : vector<2x1xf32> to vector<2x128xf32>
    %394 = vector.broadcast %1 : vector<1x128xf32> to vector<2x128xf32>
    %395 = arith.mulf %393, %394 : vector<2x128xf32>
    %cst_81 = arith.constant dense<0.000000e+00> : vector<2x128xf32>
    %396 = tpu.matmul %377, %2, %cst_81 {dimension_numbers = #tpu.dot_dimension_numbers<[1], [0], [0], [1], [0, 0, 1, 1], [], []>} : vector<2x32xf32>, vector<32x128xf32>, vector<2x128xf32> -> vector<2x128xf32>
    %397 = arith.addf %395, %396 : vector<2x128xf32>
    %398 = vector.broadcast %3 : vector<1x128xf32> to vector<2x128xf32>
    %399 = arith.addf %397, %398 : vector<2x128xf32>
    %400 = vector.extract_strided_slice %399 {offsets = [0, 0], sizes = [2, 32], strides = [1, 1]} : vector<2x128xf32> to vector<2x32xf32>
    %401 = arith.negf %400 : vector<2x32xf32>
    %402 = math.exp %401 : vector<2x32xf32>
    %cst_82 = arith.constant 1.000000e+00 : f32
    %403 = vector.broadcast %cst_82 : f32 to vector<2x32xf32>
    %404 = arith.addf %403, %402 : vector<2x32xf32>
    %405 = arith.divf %403, %404 : vector<2x32xf32>
    %406 = vector.extract_strided_slice %399 {offsets = [0, 32], sizes = [2, 32], strides = [1, 1]} : vector<2x128xf32> to vector<2x32xf32>
    %407 = arith.negf %406 : vector<2x32xf32>
    %408 = math.exp %407 : vector<2x32xf32>
    %cst_83 = arith.constant 1.000000e+00 : f32
    %409 = vector.broadcast %cst_83 : f32 to vector<2x32xf32>
    %410 = arith.addf %409, %408 : vector<2x32xf32>
    %411 = arith.divf %409, %410 : vector<2x32xf32>
    %412 = vector.extract_strided_slice %399 {offsets = [0, 64], sizes = [2, 32], strides = [1, 1]} : vector<2x128xf32> to vector<2x32xf32>
    %413 = math.tanh %412 : vector<2x32xf32>
    %414 = vector.extract_strided_slice %399 {offsets = [0, 96], sizes = [2, 32], strides = [1, 1]} : vector<2x128xf32> to vector<2x32xf32>
    %415 = arith.negf %414 : vector<2x32xf32>
    %416 = math.exp %415 : vector<2x32xf32>
    %cst_84 = arith.constant 1.000000e+00 : f32
    %417 = vector.broadcast %cst_84 : f32 to vector<2x32xf32>
    %418 = arith.addf %417, %416 : vector<2x32xf32>
    %419 = arith.divf %417, %418 : vector<2x32xf32>
    %420 = arith.mulf %411, %375 : vector<2x32xf32>
    %421 = arith.mulf %405, %413 : vector<2x32xf32>
    %422 = arith.addf %420, %421 : vector<2x32xf32>
    %423 = math.tanh %422 : vector<2x32xf32>
    %424 = arith.mulf %419, %423 : vector<2x32xf32>
    %425 = vector.broadcast %4 : vector<1x32xf32> to vector<2x32xf32>
    %426 = arith.mulf %424, %425 : vector<2x32xf32>
    %cst_85 = arith.constant dense<0.000000e+00> : vector<2xf32>
    %427 = vector.multi_reduction <add>, %426, %cst_85 [1] : vector<2x32xf32> to vector<2xf32>
    %428 = vector.shape_cast %427 : vector<2xf32> to vector<2x1xf32>
    %429 = vector.broadcast %5 : vector<1x1xf32> to vector<2x1xf32>
    %430 = arith.addf %428, %429 : vector<2x1xf32>
    %431 = tpu.concatenate %289, %336, %383, %430 in 1 : vector<2x1xf32>, vector<2x1xf32>, vector<2x1xf32>, vector<2x1xf32> -> vector<2x4xf32>
    %c0_86 = arith.constant 0 : index
    %c0_87 = arith.constant 0 : index
    %432 = vector.load %arg11[%c0_86, %c0_87] : memref<2x4xf32, #tpu.memory_space<vmem>>, vector<2x4xf32>
    tpu.vector_store %arg11[%c0_86, %c0_87], %431 {strides = array<i32>} : memref<2x4xf32, #tpu.memory_space<vmem>>, vector<2x4xf32>,
    return
  }
}

</mosaic_0001>

<llo_original>
// kernel: tpu_custom_call.1
$region0: #{tpu_custom_call.1}
  #allocation0 [shape = 'u32[]', space=smem, size = 0x4, offset = 0x4, fixed_abs, tag = 'smem constant byte address 0x4 - core index']
  #allocation1 [shape = 'u32[144,128]{1,0:T(1,128)}', space=vmem, size = 0x12000, scoped, tag = 'internal scratch']
  #allocation2 [shape = 'f32[1,1]{1,0:T(1,128)S(1)}', space=vmem, size = 0x200, scoped, tag = 'scoped memory for tpu_custom_call.1']
  %s0 = inlined_call_operand.vmem [shape: f32[4], index: 0, kind: input, shape index: {}]
  %s1 = inlined_call_operand.vmem [shape: f32[8,2,1], index: 1, kind: input, shape index: {}]
  %s2 = inlined_call_operand.vmem [shape: f32[4,2,1], index: 2, kind: input, shape index: {}]
  %s3 = inlined_call_operand.vmem [shape: f32[1,128], index: 3, kind: input, shape index: {}]
  %s4 = inlined_call_operand.vmem [shape: f32[32,128], index: 4, kind: input, shape index: {}]
  %s5 = inlined_call_operand.vmem [shape: f32[1,128], index: 5, kind: input, shape index: {}]
  %s6 = inlined_call_operand.vmem [shape: f32[1,128], index: 6, kind: input, shape index: {}]
  %s7 = inlined_call_operand.hbm [shape: f32[32,128], index: 7, kind: input, shape index: {}]
  %s8 = inlined_call_operand.vmem [shape: f32[1,128], index: 8, kind: input, shape index: {}]
  %s9 = inlined_call_operand.vmem [shape: f32[1,32], index: 9, kind: input, shape index: {}]
  %s10 = inlined_call_operand.<no memory space> [shape: f32[1,1], index: 10, kind: input, shape index: {}]
  %s11 = inlined_call_operand.hbm [shape: f32[2,4], index: 11, kind: output, shape index: {}]
  %s12 = sld [smem:[#allocation0]]
  $region62: #{tpu_custom_call.1} parent=0
    _
  %s14 = ssub.s32 1, %s12
  %s15 = scalar_select 0, %s14, %s12
  %v16 = vstv %s10
  %17 = vst [vmem:[#allocation2] sm:$0x1] %v16
  $region1: #{tpu_custom_call.1} parent=0
    #allocation3 [shape = 'u8[512]{0}', space=smem, size = 0x200, scoped, tag = 'input window, operand 0, single buffered']
    #allocation4 [shape = 's32[1]{0}', space=sflag, size = 0x4, scoped, tag = 'scoped memory for tpu_custom_call.1']
    #allocation5 [shape = 's32[1]{0}', space=sflag, size = 0x4, scoped, tag = 'scoped memory for tpu_custom_call.1']
    #allocation6 [shape = 's32[1]{0}', space=sflag, size = 0x4, scoped, tag = 'scoped memory for tpu_custom_call.1']
    #allocation7 [shape = 'u8[16384]{0}', space=vmem, size = 0x4000, scoped, tag = 'input window, operand 7, single buffered']
    #allocation8 [shape = 'u8[1024]{0}', space=vmem, size = 0x400, scoped, tag = 'output window, operand 0, single buffered']
    %18 = vsyncpa [#allocation6], 0
    %19 = vsyncpa [#allocation4], 0
    %20 = vsyncpa [#allocation5], 0
    // Predicated region
    $region2: #{tpu_custom_call.1} parent=1 // pred_check
      _
    $region3: #{tpu_custom_call.1} parent=1 // pred_check_branch
      %22 = sbr.rel (0) target = $region5
    $region4: #{tpu_custom_call.1} parent=1 // pred_region
      %s24 = ssub.s32 16, 16
      %25 = vsyncadd [#allocation6], %s24
      %s27 = sshll.u32 %s0, 4
      %s28 = int_to_ptr.vmem [resolvable:$true] %s27
      %30 = dma.vmem_to_smem %s28, 16, [#allocation3], [#allocation6]
    $region5: #{tpu_custom_call.1} parent=1 // pred_fallthru
      _
    // Predicated region
    $region6: #{tpu_custom_call.1} parent=1 // pred_check
      _
    $region7: #{tpu_custom_call.1} parent=1 // pred_check_branch
      %32 = sbr.rel (0) target = $region9
    $region8: #{tpu_custom_call.1} parent=1 // pred_region
      _
    $region9: #{tpu_custom_call.1} parent=1 // pred_fallthru
      _
    // Predicated region
    $region10: #{tpu_custom_call.1} parent=1 // pred_check
      _
    $region11: #{tpu_custom_call.1} parent=1 // pred_check_branch
      %34 = sbr.rel (0) target = $region13
    $region12: #{tpu_custom_call.1} parent=1 // pred_region
      _
    $region13: #{tpu_custom_call.1} parent=1 // pred_fallthru
      _
    // Predicated region
    $region14: #{tpu_custom_call.1} parent=1 // pred_check
      _
    $region15: #{tpu_custom_call.1} parent=1 // pred_check_branch
      %36 = sbr.rel (0) target = $region17
    $region16: #{tpu_custom_call.1} parent=1 // pred_region
      _
    $region17: #{tpu_custom_call.1} parent=1 // pred_fallthru
      _
    // Predicated region
    $region18: #{tpu_custom_call.1} parent=1 // pred_check
      _
    $region19: #{tpu_custom_call.1} parent=1 // pred_check_branch
      %38 = sbr.rel (0) target = $region21
    $region20: #{tpu_custom_call.1} parent=1 // pred_region
      _
    $region21: #{tpu_custom_call.1} parent=1 // pred_fallthru
      _
    // Predicated region
    $region22: #{tpu_custom_call.1} parent=1 // pred_check
      _
    $region23: #{tpu_custom_call.1} parent=1 // pred_check_branch
      %40 = sbr.rel (0) target = $region25
    $region24: #{tpu_custom_call.1} parent=1 // pred_region
      _
    $region25: #{tpu_custom_call.1} parent=1 // pred_fallthru
      _
    // Predicated region
    $region26: #{tpu_custom_call.1} parent=1 // pred_check
      _
    $region27: #{tpu_custom_call.1} parent=1 // pred_check_branch
      %42 = sbr.rel (0) target = $region29
    $region28: #{tpu_custom_call.1} parent=1 // pred_region
      _
    $region29: #{tpu_custom_call.1} parent=1 // pred_fallthru
      _
    // Predicated region
    $region30: #{tpu_custom_call.1} parent=1 // pred_check
      _
    $region31: #{tpu_custom_call.1} parent=1 // pred_check_branch
      %44 = sbr.rel (0) target = $region33
    $region32: #{tpu_custom_call.1} parent=1 // pred_region
      %s46 = ssub.s32 512, 512
      %47 = vsyncadd [#allocation4], %s46
      %s48 = sshll.u32 [#allocation7], 4
      %s49 = int_to_ptr.vmem [resolvable:$true] %s48
      %54 = dma.hbm_to_vmem [thread:$0]  %s7, 512, %s49, [#allocation4], 128, 128, 8
    $region33: #{tpu_custom_call.1} parent=1 // pred_fallthru
      _
    // Predicated region
    $region34: #{tpu_custom_call.1} parent=1 // pred_check
      _
    $region35: #{tpu_custom_call.1} parent=1 // pred_check_branch
      %56 = sbr.rel (0) target = $region37
    $region36: #{tpu_custom_call.1} parent=1 // pred_region
      _
    $region37: #{tpu_custom_call.1} parent=1 // pred_fallthru
      _
    // Predicated region
    $region38: #{tpu_custom_call.1} parent=1 // pred_check
      _
    $region39: #{tpu_custom_call.1} parent=1 // pred_check_branch
      %58 = sbr.rel (0) target = $region41
    $region40: #{tpu_custom_call.1} parent=1 // pred_region
      _
    $region41: #{tpu_custom_call.1} parent=1 // pred_fallthru
      _
    // Predicated region
    $region42: #{tpu_custom_call.1} parent=1 // pred_check
      _
    $region43: #{tpu_custom_call.1} parent=1 // pred_check_branch
      %60 = sbr.rel (0) target = $region45
    $region44: #{tpu_custom_call.1} parent=1 // pred_region
      _
    $region45: #{tpu_custom_call.1} parent=1 // pred_fallthru
      _
    // Predicated region
    $region46: #{tpu_custom_call.1} parent=1 // pred_check
      _
    $region47: #{tpu_custom_call.1} parent=1 // pred_check_branch
      %62 = sbr.rel (0) target = $region49
    $region48: #{tpu_custom_call.1} parent=1 // pred_region
      %63 = dma.done [#allocation6], 16
    $region49: #{tpu_custom_call.1} parent=1 // pred_fallthru
      _
    // Predicated region
    $region50: #{tpu_custom_call.1} parent=1 // pred_check
      _
    $region51: #{tpu_custom_call.1} parent=1 // pred_check_branch
      %65 = sbr.rel (0) target = $region53
    $region52: #{tpu_custom_call.1} parent=1 // pred_region
      %66 = dma.done [#allocation4], 512
    $region53: #{tpu_custom_call.1} parent=1 // pred_fallthru
      _
    %67 = sfence
    %v68 = vld [vmem:[%s4] sm:$0xff]
    %v69 = vld [vmem:[%s4 + $0x8] sm:$0xff]
    %v70 = vld [vmem:[%s4 + $0x10] sm:$0xff]
    %v71 = vld [vmem:[%s4 + $0x18] sm:$0xff]
    %v72 = vld [vmem:[%s6] sm:$0x1]
    %v73 = vld [vmem:[#allocation7] sm:$0xff]
    %v74 = vld [vmem:[#allocation7 + $0x8] sm:$0xff]
    %v75 = vld [vmem:[#allocation7 + $0x10] sm:$0xff]
    %v76 = vld [vmem:[#allocation7 + $0x18] sm:$0xff]
    %v77 = vld [vmem:[%s8] sm:$0x1]
    %v78 = vld [vmem:[%s9] sm:$0x1]
    %v79 = vld [vmem:[#allocation2] sm:$0x1]
    %v80 = vld [vmem:[%s1] sm:$0x3]
    %v81 = vld [vmem:[%s1 + $0x2] sm:$0x3]
    %v82 = vld [vmem:[%s1 + $0x4] sm:$0x3]
    %v83 = vld [vmem:[%s1 + $0x6] sm:$0x3]
    %v84 = vld [vmem:[%s1 + $0x8] sm:$0x3]
    %v85 = vld [vmem:[%s1 + $0xa] sm:$0x3]
    %v86 = vld [vmem:[%s1 + $0xc] sm:$0x3]
    %v87 = vld [vmem:[%s1 + $0xe] sm:$0x3]
    %v88 = vld [vmem:[%s3] sm:$0x1]
    %90 = vset.pattern.permute.xlu0 0
    %91 = vperm.xlu0 %90, %v80
    %v92 = vpop.permute.xlu0 %91
    %95 = vset.pattern.permute.xlu0 0
    %96 = vperm.xlu0 %95, %v81
    %v97 = vpop.permute.xlu0 %96
    %100 = vset.pattern.permute.xlu0 0
    %101 = vperm.xlu0 %100, %v82
    %v102 = vpop.permute.xlu0 %101
    %105 = vset.pattern.permute.xlu0 0
    %106 = vperm.xlu0 %105, %v83
    %v107 = vpop.permute.xlu0 %106
    %110 = vset.pattern.permute.xlu0 0
    %111 = vperm.xlu0 %110, %v84
    %v112 = vpop.permute.xlu0 %111
    %115 = vset.pattern.permute.xlu0 0
    %116 = vperm.xlu0 %115, %v85
    %v117 = vpop.permute.xlu0 %116
    %120 = vset.pattern.permute.xlu0 0
    %121 = vperm.xlu0 %120, %v86
    %v122 = vpop.permute.xlu0 %121
    %125 = vset.pattern.permute.xlu0 0
    %126 = vperm.xlu0 %125, %v87
    %v127 = vpop.permute.xlu0 %126
    %v130 = vlaneseq
    %v131 = vshrl.u32 %v130, 7
    %v132 = vsub.s32 0, %v131
    %v133 = vrot.slane %v88, %v132
    %v135 = vmul.f32 %v92, %v133
    %v136 = vmul.f32 %v97, %v133
    %v137 = vmul.f32 %v102, %v133
    %v138 = vmul.f32 %v107, %v133
    %v139 = vmul.f32 %v112, %v133
    %v140 = vmul.f32 %v117, %v133
    %v141 = vmul.f32 %v122, %v133
    %v142 = vmul.f32 %v127, %v133
    %v143 = vld [vmem:[%s5] sm:$0x1]
    %v145 = vlaneseq
    %v146 = vshrl.u32 %v145, 7
    %v147 = vsub.s32 0, %v146
    %v148 = vrot.slane %v143, %v147
    %v150 = vadd.f32 %v135, %v148
    %v151 = vadd.f32 %v136, %v148
    %v152 = vadd.f32 %v137, %v148
    %v153 = vadd.f32 %v138, %v148
    %v154 = vadd.f32 %v139, %v148
    %v155 = vadd.f32 %v140, %v148
    %v156 = vadd.f32 %v141, %v148
    %v157 = vadd.f32 %v142, %v148
    %vm158 = vcmask 261120
    %v160 = vsel %vm158, 0.0, 0
    %162 = vmatprep.subr.mxu0 0.0
    %163 = vmatpush1.msra.mxu0 %v68
    %164 = vmatprep.subr.mxu0 0.0
    %165 = vmatpush1.msra.mxu0 %v69
    %166 = vmatprep.subr.mxu0 0.0
    %167 = vmatpush1.msra.mxu0 %v70
    %168 = vmatprep.subr.mxu0 0.0
    %169 = vmatpush1.msra.mxu0 %v71
    %170 = vmatprep.subr.mxu0 0.0
    %171 = vmatpush1.msra.mxu0 0.0
    %172 = vmatprep.subr.mxu0 0.0
    %173 = vmatpush1.msra.mxu0 0.0
    %174 = vmatprep.subr.mxu0 0.0
    %175 = vmatpush1.msra.mxu0 0.0
    %176 = vmatprep.subr.mxu0 0.0
    %177 = vmatpush1.msra.mxu0 0.0
    %178 = vmatprep.subr.mxu0 0.0
    %179 = vmatpush1.msra.mxu0 0.0
    %180 = vmatprep.subr.mxu0 0.0
    %181 = vmatpush1.msra.mxu0 0.0
    %182 = vmatprep.subr.mxu0 0.0
    %183 = vmatpush1.msra.mxu0 0.0
    %184 = vmatprep.subr.mxu0 0.0
    %185 = vmatpush1.msra.mxu0 0.0
    %186 = vmatprep.subr.mxu0 0.0
    %187 = vmatpush1.msra.mxu0 0.0
    %188 = vmatprep.subr.mxu0 0.0
    %189 = vmatpush1.msra.mxu0 0.0
    %190 = vmatprep.subr.mxu0 0.0
    %191 = vmatpush1.msra.mxu0 0.0
    %192 = vmatprep.subr.mxu0 0.0
    %193 = vmatpush1.msra.mxu0 0.0
    %194 = vmatprep.subr.mxu0 0.0
    %195 = vmatpush1.msra.mxu0 0.0
    %196 = vmatprep.subr.mxu0 0.0
    %197 = vmatpush1.msra.mxu0 0.0
    %198 = vmatprep.subr.mxu0 0.0
    %199 = vmatpush1.msra.mxu0 0.0
    %200 = vmatprep.subr.mxu0 0.0
    %201 = vmatpush1.msra.mxu0 0.0
    %202 = vmatprep.subr.mxu0 0.0
    %203 = vmatpush1.msra.mxu0 0.0
    %204 = vmatprep.subr.mxu0 0.0
    %205 = vmatpush1.msra.mxu0 0.0
    %206 = vmatprep.subr.mxu0 0.0
    %207 = vmatpush1.msra.mxu0 0.0
    %208 = vmatprep.subr.mxu0 0.0
    %209 = vmatpush1.msra.mxu0 0.0
    %210 = vmatprep.subr.mxu0 0.0
    %211 = vmatpush1.msra.mxu0 0.0
    %212 = vmatprep.subr.mxu0 0.0
    %213 = vmatpush1.msra.mxu0 0.0
    %214 = vmatprep.subr.mxu0 0.0
    %215 = vmatpush1.msra.mxu0 0.0
    %216 = vmatprep.subr.mxu0 0.0
    %217 = vmatpush1.msra.mxu0 0.0
    %218 = vmatprep.subr.mxu0 0.0
    %219 = vmatpush1.msra.mxu0 0.0
    %220 = vmatprep.subr.mxu0 0.0
    %221 = vmatpush1.msra.mxu0 0.0
    %222 = vmatprep.subr.mxu0 0.0
    %223 = vmatpush1.msra.mxu0 0.0
    %224 = vmatprep.subr.mxu0 0.0
    %225 = vmatpush1.msra.mxu0 0.0
    %226 = vmatprep.mubr.f32.mxu0 0.0
    %227 = vmatmul.mubr.f32.gmra.mrb[0].mxu0 %v160
    %v228 = vpop.f32.mrb[0].mxu0
    %v229 = vadd.f32 0.0, %v228
    %v230 = vpop.f32.mrb[0].mxu0
    %231 = vdwg.mxu0
    %v232 = vadd.f32 %v150, %v229
    %v233 = vxor.u32 %v232, 2147483648
    %v234 = vmul.f32 %v233, 1.442695
    %v235 = vpow.pop %v234
    %v236 = vadd.f32 %v235, 1.0
    %v237 = vrcp.pop %v236
    %v238 = vmul.f32 1.0, %v237
    %v239 = vtanh.pop %v232
    %v240 = vmul.f32 %v238, 0.0
    %242 = vrot.lane.b32.xlu0 %v239, 64
    %v243 = vpop.permute.xlu0 %242
    %v245 = vmul.f32 %v238, %v243
    %247 = vrot.lane.b32.xlu0 %v245, 32
    %v248 = vpop.permute.xlu0 %247
    %v250 = vadd.f32 %v240, %v248
    %v251 = vtanh.pop %v250
    %253 = vrot.lane.b32.xlu0 %v251, 64
    %v254 = vpop.permute.xlu0 %253
    %v256 = vmul.f32 %v238, %v254
    %258 = vrot.lane.b32.xlu0 %v256, 32
    %v259 = vpop.permute.xlu0 %258
    %v260 = vsel %vm158, %v259, 0
    %262 = vmatprep.subr.mxu0 0.0
    %263 = vmatpush1.msra.mxu0 %v68
    %264 = vmatprep.subr.mxu0 0.0
    %265 = vmatpush1.msra.mxu0 %v69
    %266 = vmatprep.subr.mxu0 0.0
    %267 = vmatpush1.msra.mxu0 %v70
    %268 = vmatprep.subr.mxu0 0.0
    %269 = vmatpush1.msra.mxu0 %v71
    %270 = vmatprep.subr.mxu0 0.0
    %271 = vmatpush1.msra.mxu0 0.0
    %272 = vmatprep.subr.mxu0 0.0
    %273 = vmatpush1.msra.mxu0 0.0
    %274 = vmatprep.subr.mxu0 0.0
    %275 = vmatpush1.msra.mxu0 0.0
    %276 = vmatprep.subr.mxu0 0.0
    %277 = vmatpush1.msra.mxu0 0.0
    %278 = vmatprep.subr.mxu0 0.0
    %279 = vmatpush1.msra.mxu0 0.0
    %280 = vmatprep.subr.mxu0 0.0
    %281 = vmatpush1.msra.mxu0 0.0
    %282 = vmatprep.subr.mxu0 0.0
    %283 = vmatpush1.msra.mxu0 0.0
    %284 = vmatprep.subr.mxu0 0.0
    %285 = vmatpush1.msra.mxu0 0.0
    %286 = vmatprep.subr.mxu0 0.0
    %287 = vmatpush1.msra.mxu0 0.0
    %288 = vmatprep.subr.mxu0 0.0
    %289 = vmatpush1.msra.mxu0 0.0
    %290 = vmatprep.subr.mxu0 0.0
    %291 = vmatpush1.msra.mxu0 0.0
    %292 = vmatprep.subr.mxu0 0.0
    %293 = vmatpush1.msra.mxu0 0.0
    %294 = vmatprep.subr.mxu0 0.0
    %295 = vmatpush1.msra.mxu0 0.0
    %296 = vmatprep.subr.mxu0 0.0
    %297 = vmatpush1.msra.mxu0 0.0
    %298 = vmatprep.subr.mxu0 0.0
    %299 = vmatpush1.msra.mxu0 0.0
    %300 = vmatprep.subr.mxu0 0.0
    %301 = vmatpush1.msra.mxu0 0.0
    %302 = vmatprep.subr.mxu0 0.0
    %303 = vmatpush1.msra.mxu0 0.0
    %304 = vmatprep.subr.mxu0 0.0
    %305 = vmatpush1.msra.mxu0 0.0
    %306 = vmatprep.subr.mxu0 0.0
    %307 = vmatpush1.msra.mxu0 0.0
    %308 = vmatprep.subr.mxu0 0.0
    %309 = vmatpush1.msra.mxu0 0.0
    %310 = vmatprep.subr.mxu0 0.0
    %311 = vmatpush1.msra.mxu0 0.0
    %312 = vmatprep.subr.mxu0 0.0
    %313 = vmatpush1.msra.mxu0 0.0
    %314 = vmatprep.subr.mxu0 0.0
    %315 = vmatpush1.msra.mxu0 0.0
    %316 = vmatprep.subr.mxu0 0.0
    %317 = vmatpush1.msra.mxu0 0.0
    %318 = vmatprep.subr.mxu0 0.0
    %319 = vmatpush1.msra.mxu0 0.0
    %320 = vmatprep.subr.mxu0 0.0
    %321 = vmatpush1.msra.mxu0 0.0
    %322 = vmatprep.subr.mxu0 0.0
    %323 = vmatpush1.msra.mxu0 0.0
    %324 = vmatprep.subr.mxu0 0.0
    %325 = vmatpush1.msra.mxu0 0.0
    %326 = vmatprep.mubr.f32.mxu0 0.0
    %327 = vmatmul.mubr.f32.gmra.mrb[0].mxu0 %v260
    %v328 = vpop.f32.mrb[0].mxu0
    %v329 = vadd.f32 0.0, %v328
    %v330 = vpop.f32.mrb[0].mxu0
    %331 = vdwg.mxu0
    %v332 = vadd.f32 %v151, %v329
    %v333 = vxor.u32 %v332, 2147483648
    %v334 = vmul.f32 %v333, 1.442695
    %v335 = vpow.pop %v334
    %v336 = vadd.f32 %v335, 1.0
    %v337 = vrcp.pop %v336
    %v338 = vmul.f32 1.0, %v337
    %v339 = vtanh.pop %v332
    %v340 = vmul.f32 %v338, %v250
    %342 = vrot.lane.b32.xlu0 %v339, 64
    %v343 = vpop.permute.xlu0 %342
    %v345 = vmul.f32 %v338, %v343
    %347 = vrot.lane.b32.xlu0 %v345, 32
    %v348 = vpop.permute.xlu0 %347
    %v350 = vadd.f32 %v340, %v348
    %v351 = vtanh.pop %v350
    %353 = vrot.lane.b32.xlu0 %v351, 64
    %v354 = vpop.permute.xlu0 %353
    %v356 = vmul.f32 %v338, %v354
    %358 = vrot.lane.b32.xlu0 %v356, 32
    %v359 = vpop.permute.xlu0 %358
    %v360 = vsel %vm158, %v359, 0
    %362 = vmatprep.subr.mxu0 0.0
    %363 = vmatpush1.msra.mxu0 %v68
    %364 = vmatprep.subr.mxu0 0.0
    %365 = vmatpush1.msra.mxu0 %v69
    %366 = vmatprep.subr.mxu0 0.0
    %367 = vmatpush1.msra.mxu0 %v70
    %368 = vmatprep.subr.mxu0 0.0
    %369 = vmatpush1.msra.mxu0 %v71
    %370 = vmatprep.subr.mxu0 0.0
    %371 = vmatpush1.msra.mxu0 0.0
    %372 = vmatprep.subr.mxu0 0.0
    %373 = vmatpush1.msra.mxu0 0.0
    %374 = vmatprep.subr.mxu0 0.0
    %375 = vmatpush1.msra.mxu0 0.0
    %376 = vmatprep.subr.mxu0 0.0
    %377 = vmatpush1.msra.mxu0 0.0
    %378 = vmatprep.subr.mxu0 0.0
    %379 = vmatpush1.msra.mxu0 0.0
    %380 = vmatprep.subr.mxu0 0.0
    %381 = vmatpush1.msra.mxu0 0.0
    %382 = vmatprep.subr.mxu0 0.0
    %383 = vmatpush1.msra.mxu0 0.0
    %384 = vmatprep.subr.mxu0 0.0
    %385 = vmatpush1.msra.mxu0 0.0
    %386 = vmatprep.subr.mxu0 0.0
    %387 = vmatpush1.msra.mxu0 0.0
    %388 = vmatprep.subr.mxu0 0.0
    %389 = vmatpush1.msra.mxu0 0.0
    %390 = vmatprep.subr.mxu0 0.0
    %391 = vmatpush1.msra.mxu0 0.0
    %392 = vmatprep.subr.mxu0 0.0
    %393 = vmatpush1.msra.mxu0 0.0
    %394 = vmatprep.subr.mxu0 0.0
    %395 = vmatpush1.msra.mxu0 0.0
    %396 = vmatprep.subr.mxu0 0.0
    %397 = vmatpush1.msra.mxu0 0.0
    %398 = vmatprep.subr.mxu0 0.0
    %399 = vmatpush1.msra.mxu0 0.0
    %400 = vmatprep.subr.mxu0 0.0
    %401 = vmatpush1.msra.mxu0 0.0
    %402 = vmatprep.subr.mxu0 0.0
    %403 = vmatpush1.msra.mxu0 0.0
    %404 = vmatprep.subr.mxu0 0.0
    %405 = vmatpush1.msra.mxu0 0.0
    %406 = vmatprep.subr.mxu0 0.0
    %407 = vmatpush1.msra.mxu0 0.0
    %408 = vmatprep.subr.mxu0 0.0
    %409 = vmatpush1.msra.mxu0 0.0
    %410 = vmatprep.subr.mxu0 0.0
    %411 = vmatpush1.msra.mxu0 0.0
    %412 = vmatprep.subr.mxu0 0.0
    %413 = vmatpush1.msra.mxu0 0.0
    %414 = vmatprep.subr.mxu0 0.0
    %415 = vmatpush1.msra.mxu0 0.0
    %416 = vmatprep.subr.mxu0 0.0
    %417 = vmatpush1.msra.mxu0 0.0
    %418 = vmatprep.subr.mxu0 0.0
    %419 = vmatpush1.msra.mxu0 0.0
    %420 = vmatprep.subr.mxu0 0.0
    %421 = vmatpush1.msra.mxu0 0.0
    %422 = vmatprep.subr.mxu0 0.0
    %423 = vmatpush1.msra.mxu0 0.0
    %424 = vmatprep.subr.mxu0 0.0
    %425 = vmatpush1.msra.mxu0 0.0
    %426 = vmatprep.mubr.f32.mxu0 0.0
    %427 = vmatmul.mubr.f32.gmra.mrb[0].mxu0 %v360
    %v428 = vpop.f32.mrb[0].mxu0
    %v429 = vadd.f32 0.0, %v428
    %v430 = vpop.f32.mrb[0].mxu0
    %431 = vdwg.mxu0
    %v432 = vadd.f32 %v152, %v429
    %v433 = vxor.u32 %v432, 2147483648
    %v434 = vmul.f32 %v433, 1.442695
    %v435 = vpow.pop %v434
    %v436 = vadd.f32 %v435, 1.0
    %v437 = vrcp.pop %v436
    %v438 = vmul.f32 1.0, %v437
    %v439 = vtanh.pop %v432
    %v440 = vmul.f32 %v438, %v350
    %442 = vrot.lane.b32.xlu0 %v439, 64
    %v443 = vpop.permute.xlu0 %442
    %v445 = vmul.f32 %v438, %v443
    %447 = vrot.lane.b32.xlu0 %v445, 32
    %v448 = vpop.permute.xlu0 %447
    %v450 = vadd.f32 %v440, %v448
    %v451 = vtanh.pop %v450
    %453 = vrot.lane.b32.xlu0 %v451, 64
    %v454 = vpop.permute.xlu0 %453
    %v456 = vmul.f32 %v438, %v454
    %458 = vrot.lane.b32.xlu0 %v456, 32
    %v459 = vpop.permute.xlu0 %458
    %v460 = vsel %vm158, %v459, 0
    %462 = vmatprep.subr.mxu0 0.0
    %463 = vmatpush1.msra.mxu0 %v68
    %464 = vmatprep.subr.mxu0 0.0
    %465 = vmatpush1.msra.mxu0 %v69
    %466 = vmatprep.subr.mxu0 0.0
    %467 = vmatpush1.msra.mxu0 %v70
    %468 = vmatprep.subr.mxu0 0.0
    %469 = vmatpush1.msra.mxu0 %v71
    %470 = vmatprep.subr.mxu0 0.0
    %471 = vmatpush1.msra.mxu0 0.0
    %472 = vmatprep.subr.mxu0 0.0
    %473 = vmatpush1.msra.mxu0 0.0
    %474 = vmatprep.subr.mxu0 0.0
    %475 = vmatpush1.msra.mxu0 0.0
    %476 = vmatprep.subr.mxu0 0.0
    %477 = vmatpush1.msra.mxu0 0.0
    %478 = vmatprep.subr.mxu0 0.0
    %479 = vmatpush1.msra.mxu0 0.0
    %480 = vmatprep.subr.mxu0 0.0
    %481 = vmatpush1.msra.mxu0 0.0
    %482 = vmatprep.subr.mxu0 0.0
    %483 = vmatpush1.msra.mxu0 0.0
    %484 = vmatprep.subr.mxu0 0.0
    %485 = vmatpush1.msra.mxu0 0.0
    %486 = vmatprep.subr.mxu0 0.0
    %487 = vmatpush1.msra.mxu0 0.0
    %488 = vmatprep.subr.mxu0 0.0
    %489 = vmatpush1.msra.mxu0 0.0
    %490 = vmatprep.subr.mxu0 0.0
    %491 = vmatpush1.msra.mxu0 0.0
    %492 = vmatprep.subr.mxu0 0.0
    %493 = vmatpush1.msra.mxu0 0.0
    %494 = vmatprep.subr.mxu0 0.0
    %495 = vmatpush1.msra.mxu0 0.0
    %496 = vmatprep.subr.mxu0 0.0
    %497 = vmatpush1.msra.mxu0 0.0
    %498 = vmatprep.subr.mxu0 0.0
    %499 = vmatpush1.msra.mxu0 0.0
    %500 = vmatprep.subr.mxu0 0.0
    %501 = vmatpush1.msra.mxu0 0.0
    %502 = vmatprep.subr.mxu0 0.0
    %503 = vmatpush1.msra.mxu0 0.0
    %504 = vmatprep.subr.mxu0 0.0
    %505 = vmatpush1.msra.mxu0 0.0
    %506 = vmatprep.subr.mxu0 0.0
    %507 = vmatpush1.msra.mxu0 0.0
    %508 = vmatprep.subr.mxu0 0.0
    %509 = vmatpush1.msra.mxu0 0.0
    %510 = vmatprep.subr.mxu0 0.0
    %511 = vmatpush1.msra.mxu0 0.0
    %512 = vmatprep.subr.mxu0 0.0
    %513 = vmatpush1.msra.mxu0 0.0
    %514 = vmatprep.subr.mxu0 0.0
    %515 = vmatpush1.msra.mxu0 0.0
    %516 = vmatprep.subr.mxu0 0.0
    %517 = vmatpush1.msra.mxu0 0.0
    %518 = vmatprep.subr.mxu0 0.0
    %519 = vmatpush1.msra.mxu0 0.0
    %520 = vmatprep.subr.mxu0 0.0
    %521 = vmatpush1.msra.mxu0 0.0
    %522 = vmatprep.subr.mxu0 0.0
    %523 = vmatpush1.msra.mxu0 0.0
    %524 = vmatprep.subr.mxu0 0.0
    %525 = vmatpush1.msra.mxu0 0.0
    %526 = vmatprep.mubr.f32.mxu0 0.0
    %527 = vmatmul.mubr.f32.gmra.mrb[0].mxu0 %v460
    %v528 = vpop.f32.mrb[0].mxu0
    %v529 = vadd.f32 0.0, %v528
    %v530 = vpop.f32.mrb[0].mxu0
    %531 = vdwg.mxu0
    %v532 = vadd.f32 %v153, %v529
    %v533 = vxor.u32 %v532, 2147483648
    %v534 = vmul.f32 %v533, 1.442695
    %v535 = vpow.pop %v534
    %v536 = vadd.f32 %v535, 1.0
    %v537 = vrcp.pop %v536
    %v538 = vmul.f32 1.0, %v537
    %v539 = vtanh.pop %v532
    %v540 = vmul.f32 %v538, %v450
    %542 = vrot.lane.b32.xlu0 %v539, 64
    %v543 = vpop.permute.xlu0 %542
    %v545 = vmul.f32 %v538, %v543
    %547 = vrot.lane.b32.xlu0 %v545, 32
    %v548 = vpop.permute.xlu0 %547
    %v550 = vadd.f32 %v540, %v548
    %v551 = vtanh.pop %v550
    %553 = vrot.lane.b32.xlu0 %v551, 64
    %v554 = vpop.permute.xlu0 %553
    %v556 = vmul.f32 %v538, %v554
    %558 = vrot.lane.b32.xlu0 %v556, 32
    %v559 = vpop.permute.xlu0 %558
    %v560 = vsel %vm158, %v559, 0
    %562 = vmatprep.subr.mxu0 0.0
    %563 = vmatpush1.msra.mxu0 %v68
    %564 = vmatprep.subr.mxu0 0.0
    %565 = vmatpush1.msra.mxu0 %v69
    %566 = vmatprep.subr.mxu0 0.0
    %567 = vmatpush1.msra.mxu0 %v70
    %568 = vmatprep.subr.mxu0 0.0
    %569 = vmatpush1.msra.mxu0 %v71
    %570 = vmatprep.subr.mxu0 0.0
    %571 = vmatpush1.msra.mxu0 0.0
    %572 = vmatprep.subr.mxu0 0.0
    %573 = vmatpush1.msra.mxu0 0.0
    %574 = vmatprep.subr.mxu0 0.0
    %575 = vmatpush1.msra.mxu0 0.0
    %576 = vmatprep.subr.mxu0 0.0
    %577 = vmatpush1.msra.mxu0 0.0
    %578 = vmatprep.subr.mxu0 0.0
    %579 = vmatpush1.msra.mxu0 0.0
    %580 = vmatprep.subr.mxu0 0.0
    %581 = vmatpush1.msra.mxu0 0.0
    %582 = vmatprep.subr.mxu0 0.0
    %583 = vmatpush1.msra.mxu0 0.0
    %584 = vmatprep.subr.mxu0 0.0
    %585 = vmatpush1.msra.mxu0 0.0
    %586 = vmatprep.subr.mxu0 0.0
    %587 = vmatpush1.msra.mxu0 0.0
    %588 = vmatprep.subr.mxu0 0.0
    %589 = vmatpush1.msra.mxu0 0.0
    %590 = vmatprep.subr.mxu0 0.0
    %591 = vmatpush1.msra.mxu0 0.0
    %592 = vmatprep.subr.mxu0 0.0
    %593 = vmatpush1.msra.mxu0 0.0
    %594 = vmatprep.subr.mxu0 0.0
    %595 = vmatpush1.msra.mxu0 0.0
    %596 = vmatprep.subr.mxu0 0.0
    %597 = vmatpush1.msra.mxu0 0.0
    %598 = vmatprep.subr.mxu0 0.0
    %599 = vmatpush1.msra.mxu0 0.0
    %600 = vmatprep.subr.mxu0 0.0
    %601 = vmatpush1.msra.mxu0 0.0
    %602 = vmatprep.subr.mxu0 0.0
    %603 = vmatpush1.msra.mxu0 0.0
    %604 = vmatprep.subr.mxu0 0.0
    %605 = vmatpush1.msra.mxu0 0.0
    %606 = vmatprep.subr.mxu0 0.0
    %607 = vmatpush1.msra.mxu0 0.0
    %608 = vmatprep.subr.mxu0 0.0
    %609 = vmatpush1.msra.mxu0 0.0
    %610 = vmatprep.subr.mxu0 0.0
    %611 = vmatpush1.msra.mxu0 0.0
    %612 = vmatprep.subr.mxu0 0.0
    %613 = vmatpush1.msra.mxu0 0.0
    %614 = vmatprep.subr.mxu0 0.0
    %615 = vmatpush1.msra.mxu0 0.0
    %616 = vmatprep.subr.mxu0 0.0
    %617 = vmatpush1.msra.mxu0 0.0
    %618 = vmatprep.subr.mxu0 0.0
    %619 = vmatpush1.msra.mxu0 0.0
    %620 = vmatprep.subr.mxu0 0.0
    %621 = vmatpush1.msra.mxu0 0.0
    %622 = vmatprep.subr.mxu0 0.0
    %623 = vmatpush1.msra.mxu0 0.0
    %624 = vmatprep.subr.mxu0 0.0
    %625 = vmatpush1.msra.mxu0 0.0
    %626 = vmatprep.mubr.f32.mxu0 0.0
    %627 = vmatmul.mubr.f32.gmra.mrb[0].mxu0 %v560
    %v628 = vpop.f32.mrb[0].mxu0
    %v629 = vadd.f32 0.0, %v628
    %v630 = vpop.f32.mrb[0].mxu0
    %631 = vdwg.mxu0
    %v632 = vadd.f32 %v154, %v629
    %v633 = vxor.u32 %v632, 2147483648
    %v634 = vmul.f32 %v633, 1.442695
    %v635 = vpow.pop %v634
    %v636 = vadd.f32 %v635, 1.0
    %v637 = vrcp.pop %v636
    %v638 = vmul.f32 1.0, %v637
    %v639 = vtanh.pop %v632
    %v640 = vmul.f32 %v638, %v550
    %642 = vrot.lane.b32.xlu0 %v639, 64
    %v643 = vpop.permute.xlu0 %642
    %v645 = vmul.f32 %v638, %v643
    %647 = vrot.lane.b32.xlu0 %v645, 32
    %v648 = vpop.permute.xlu0 %647
    %v650 = vadd.f32 %v640, %v648
    %v651 = vtanh.pop %v650
    %653 = vrot.lane.b32.xlu0 %v651, 64
    %v654 = vpop.permute.xlu0 %653
    %v656 = vmul.f32 %v638, %v654
    %658 = vrot.lane.b32.xlu0 %v656, 32
    %v659 = vpop.permute.xlu0 %658
    %v660 = vsel %vm158, %v659, 0
    %662 = vmatprep.subr.mxu0 0.0
    %663 = vmatpush1.msra.mxu0 %v68
    %664 = vmatprep.subr.mxu0 0.0
    %665 = vmatpush1.msra.mxu0 %v69
    %666 = vmatprep.subr.mxu0 0.0
    %667 = vmatpush1.msra.mxu0 %v70
    %668 = vmatprep.subr.mxu0 0.0
    %669 = vmatpush1.msra.mxu0 %v71
    %670 = vmatprep.subr.mxu0 0.0
    %671 = vmatpush1.msra.mxu0 0.0
    %672 = vmatprep.subr.mxu0 0.0
    %673 = vmatpush1.msra.mxu0 0.0
    %674 = vmatprep.subr.mxu0 0.0
    %675 = vmatpush1.msra.mxu0 0.0
    %676 = vmatprep.subr.mxu0 0.0
    %677 = vmatpush1.msra.mxu0 0.0
    %678 = vmatprep.subr.mxu0 0.0
    %679 = vmatpush1.msra.mxu0 0.0
    %680 = vmatprep.subr.mxu0 0.0
    %681 = vmatpush1.msra.mxu0 0.0
    %682 = vmatprep.subr.mxu0 0.0
    %683 = vmatpush1.msra.mxu0 0.0
    %684 = vmatprep.subr.mxu0 0.0
    %685 = vmatpush1.msra.mxu0 0.0
    %686 = vmatprep.subr.mxu0 0.0
    %687 = vmatpush1.msra.mxu0 0.0
    %688 = vmatprep.subr.mxu0 0.0
    %689 = vmatpush1.msra.mxu0 0.0
    %690 = vmatprep.subr.mxu0 0.0
    %691 = vmatpush1.msra.mxu0 0.0
    %692 = vmatprep.subr.mxu0 0.0
    %693 = vmatpush1.msra.mxu0 0.0
    %694 = vmatprep.subr.mxu0 0.0
    %695 = vmatpush1.msra.mxu0 0.0
    %696 = vmatprep.subr.mxu0 0.0
    %697 = vmatpush1.msra.mxu0 0.0
    %698 = vmatprep.subr.mxu0 0.0
    %699 = vmatpush1.msra.mxu0 0.0
    %700 = vmatprep.subr.mxu0 0.0
    %701 = vmatpush1.msra.mxu0 0.0
    %702 = vmatprep.subr.mxu0 0.0
    %703 = vmatpush1.msra.mxu0 0.0
    %704 = vmatprep.subr.mxu0 0.0
    %705 = vmatpush1.msra.mxu0 0.0
    %706 = vmatprep.subr.mxu0 0.0
    %707 = vmatpush1.msra.mxu0 0.0
    %708 = vmatprep.subr.mxu0 0.0
    %709 = vmatpush1.msra.mxu0 0.0
    %710 = vmatprep.subr.mxu0 0.0
    %711 = vmatpush1.msra.mxu0 0.0
    %712 = vmatprep.subr.mxu0 0.0
    %713 = vmatpush1.msra.mxu0 0.0
    %714 = vmatprep.subr.mxu0 0.0
    %715 = vmatpush1.msra.mxu0 0.0
    %716 = vmatprep.subr.mxu0 0.0
    %717 = vmatpush1.msra.mxu0 0.0
    %718 = vmatprep.subr.mxu0 0.0
    %719 = vmatpush1.msra.mxu0 0.0
    %720 = vmatprep.subr.mxu0 0.0
    %721 = vmatpush1.msra.mxu0 0.0
    %722 = vmatprep.subr.mxu0 0.0
    %723 = vmatpush1.msra.mxu0 0.0
    %724 = vmatprep.subr.mxu0 0.0
    %725 = vmatpush1.msra.mxu0 0.0
    %726 = vmatprep.mubr.f32.mxu0 0.0
    %727 = vmatmul.mubr.f32.gmra.mrb[0].mxu0 %v660
    %v728 = vpop.f32.mrb[0].mxu0
    %v729 = vadd.f32 0.0, %v728
    %v730 = vpop.f32.mrb[0].mxu0
    %731 = vdwg.mxu0
    %v732 = vadd.f32 %v155, %v729
    %v733 = vxor.u32 %v732, 2147483648
    %v734 = vmul.f32 %v733, 1.442695
    %v735 = vpow.pop %v734
    %v736 = vadd.f32 %v735, 1.0
    %v737 = vrcp.pop %v736
    %v738 = vmul.f32 1.0, %v737
    %v739 = vtanh.pop %v732
    %v740 = vmul.f32 %v738, %v650
    %742 = vrot.lane.b32.xlu0 %v739, 64
    %v743 = vpop.permute.xlu0 %742
    %v745 = vmul.f32 %v738, %v743
    %747 = vrot.lane.b32.xlu0 %v745, 32
    %v748 = vpop.permute.xlu0 %747
    %v750 = vadd.f32 %v740, %v748
    %v751 = vtanh.pop %v750
    %753 = vrot.lane.b32.xlu0 %v751, 64
    %v754 = vpop.permute.xlu0 %753
    %v756 = vmul.f32 %v738, %v754
    %758 = vrot.lane.b32.xlu0 %v756, 32
    %v759 = vpop.permute.xlu0 %758
    %v760 = vsel %vm158, %v759, 0
    %762 = vmatprep.subr.mxu0 0.0
    %763 = vmatpush1.msra.mxu0 %v68
    %764 = vmatprep.subr.mxu0 0.0
    %765 = vmatpush1.msra.mxu0 %v69
    %766 = vmatprep.subr.mxu0 0.0
    %767 = vmatpush1.msra.mxu0 %v70
    %768 = vmatprep.subr.mxu0 0.0
    %769 = vmatpush1.msra.mxu0 %v71
    %770 = vmatprep.subr.mxu0 0.0
    %771 = vmatpush1.msra.mxu0 0.0
    %772 = vmatprep.subr.mxu0 0.0
    %773 = vmatpush1.msra.mxu0 0.0
    %774 = vmatprep.subr.mxu0 0.0
    %775 = vmatpush1.msra.mxu0 0.0
    %776 = vmatprep.subr.mxu0 0.0
    %777 = vmatpush1.msra.mxu0 0.0
    %778 = vmatprep.subr.mxu0 0.0
    %779 = vmatpush1.msra.mxu0 0.0
    %780 = vmatprep.subr.mxu0 0.0
    %781 = vmatpush1.msra.mxu0 0.0
    %782 = vmatprep.subr.mxu0 0.0
    %783 = vmatpush1.msra.mxu0 0.0
    %784 = vmatprep.subr.mxu0 0.0
    %785 = vmatpush1.msra.mxu0 0.0
    %786 = vmatprep.subr.mxu0 0.0
    %787 = vmatpush1.msra.mxu0 0.0
    %788 = vmatprep.subr.mxu0 0.0
    %789 = vmatpush1.msra.mxu0 0.0
    %790 = vmatprep.subr.mxu0 0.0
    %791 = vmatpush1.msra.mxu0 0.0
    %792 = vmatprep.subr.mxu0 0.0
    %793 = vmatpush1.msra.mxu0 0.0
    %794 = vmatprep.subr.mxu0 0.0
    %795 = vmatpush1.msra.mxu0 0.0
    %796 = vmatprep.subr.mxu0 0.0
    %797 = vmatpush1.msra.mxu0 0.0
    %798 = vmatprep.subr.mxu0 0.0
    %799 = vmatpush1.msra.mxu0 0.0
    %800 = vmatprep.subr.mxu0 0.0
    %801 = vmatpush1.msra.mxu0 0.0
    %802 = vmatprep.subr.mxu0 0.0
    %803 = vmatpush1.msra.mxu0 0.0
    %804 = vmatprep.subr.mxu0 0.0
    %805 = vmatpush1.msra.mxu0 0.0
    %806 = vmatprep.subr.mxu0 0.0
    %807 = vmatpush1.msra.mxu0 0.0
    %808 = vmatprep.subr.mxu0 0.0
    %809 = vmatpush1.msra.mxu0 0.0
    %810 = vmatprep.subr.mxu0 0.0
    %811 = vmatpush1.msra.mxu0 0.0
    %812 = vmatprep.subr.mxu0 0.0
    %813 = vmatpush1.msra.mxu0 0.0
    %814 = vmatprep.subr.mxu0 0.0
    %815 = vmatpush1.msra.mxu0 0.0
    %816 = vmatprep.subr.mxu0 0.0
    %817 = vmatpush1.msra.mxu0 0.0
    %818 = vmatprep.subr.mxu0 0.0
    %819 = vmatpush1.msra.mxu0 0.0
    %820 = vmatprep.subr.mxu0 0.0
    %821 = vmatpush1.msra.mxu0 0.0
    %822 = vmatprep.subr.mxu0 0.0
    %823 = vmatpush1.msra.mxu0 0.0
    %824 = vmatprep.subr.mxu0 0.0
    %825 = vmatpush1.msra.mxu0 0.0
    %826 = vmatprep.mubr.f32.mxu0 0.0
    %827 = vmatmul.mubr.f32.gmra.mrb[0].mxu0 %v760
    %v828 = vpop.f32.mrb[0].mxu0
    %v829 = vadd.f32 0.0, %v828
    %v830 = vpop.f32.mrb[0].mxu0
    %831 = vdwg.mxu0
    %v832 = vadd.f32 %v156, %v829
    %v833 = vxor.u32 %v832, 2147483648
    %v834 = vmul.f32 %v833, 1.442695
    %v835 = vpow.pop %v834
    %v836 = vadd.f32 %v835, 1.0
    %v837 = vrcp.pop %v836
    %v838 = vmul.f32 1.0, %v837
    %v839 = vtanh.pop %v832
    %v840 = vmul.f32 %v838, %v750
    %842 = vrot.lane.b32.xlu0 %v839, 64
    %v843 = vpop.permute.xlu0 %842
    %v845 = vmul.f32 %v838, %v843
    %847 = vrot.lane.b32.xlu0 %v845, 32
    %v848 = vpop.permute.xlu0 %847
    %v850 = vadd.f32 %v840, %v848
    %v851 = vtanh.pop %v850
    %853 = vrot.lane.b32.xlu0 %v851, 64
    %v854 = vpop.permute.xlu0 %853
    %v856 = vmul.f32 %v838, %v854
    %858 = vrot.lane.b32.xlu0 %v856, 32
    %v859 = vpop.permute.xlu0 %858
    %v860 = vsel %vm158, %v859, 0
    %862 = vmatprep.subr.mxu0 0.0
    %863 = vmatpush1.msra.mxu0 %v68
    %864 = vmatprep.subr.mxu0 0.0
    %865 = vmatpush1.msra.mxu0 %v69
    %866 = vmatprep.subr.mxu0 0.0
    %867 = vmatpush1.msra.mxu0 %v70
    %868 = vmatprep.subr.mxu0 0.0
    %869 = vmatpush1.msra.mxu0 %v71
    %870 = vmatprep.subr.mxu0 0.0
    %871 = vmatpush1.msra.mxu0 0.0
    %872 = vmatprep.subr.mxu0 0.0
    %873 = vmatpush1.msra.mxu0 0.0
    %874 = vmatprep.subr.mxu0 0.0
    %875 = vmatpush1.msra.mxu0 0.0
    %876 = vmatprep.subr.mxu0 0.0
    %877 = vmatpush1.msra.mxu0 0.0
    %878 = vmatprep.subr.mxu0 0.0
    %879 = vmatpush1.msra.mxu0 0.0
    %880 = vmatprep.subr.mxu0 0.0
    %881 = vmatpush1.msra.mxu0 0.0
    %882 = vmatprep.subr.mxu0 0.0
    %883 = vmatpush1.msra.mxu0 0.0
    %884 = vmatprep.subr.mxu0 0.0
    %885 = vmatpush1.msra.mxu0 0.0
    %886 = vmatprep.subr.mxu0 0.0
    %887 = vmatpush1.msra.mxu0 0.0
    %888 = vmatprep.subr.mxu0 0.0
    %889 = vmatpush1.msra.mxu0 0.0
    %890 = vmatprep.subr.mxu0 0.0
    %891 = vmatpush1.msra.mxu0 0.0
    %892 = vmatprep.subr.mxu0 0.0
    %893 = vmatpush1.msra.mxu0 0.0
    %894 = vmatprep.subr.mxu0 0.0
    %895 = vmatpush1.msra.mxu0 0.0
    %896 = vmatprep.subr.mxu0 0.0
    %897 = vmatpush1.msra.mxu0 0.0
    %898 = vmatprep.subr.mxu0 0.0
    %899 = vmatpush1.msra.mxu0 0.0
    %900 = vmatprep.subr.mxu0 0.0
    %901 = vmatpush1.msra.mxu0 0.0
    %902 = vmatprep.subr.mxu0 0.0
    %903 = vmatpush1.msra.mxu0 0.0
    %904 = vmatprep.subr.mxu0 0.0
    %905 = vmatpush1.msra.mxu0 0.0
    %906 = vmatprep.subr.mxu0 0.0
    %907 = vmatpush1.msra.mxu0 0.0
    %908 = vmatprep.subr.mxu0 0.0
    %909 = vmatpush1.msra.mxu0 0.0
    %910 = vmatprep.subr.mxu0 0.0
    %911 = vmatpush1.msra.mxu0 0.0
    %912 = vmatprep.subr.mxu0 0.0
    %913 = vmatpush1.msra.mxu0 0.0
    %914 = vmatprep.subr.mxu0 0.0
    %915 = vmatpush1.msra.mxu0 0.0
    %916 = vmatprep.subr.mxu0 0.0
    %917 = vmatpush1.msra.mxu0 0.0
    %918 = vmatprep.subr.mxu0 0.0
    %919 = vmatpush1.msra.mxu0 0.0
    %920 = vmatprep.subr.mxu0 0.0
    %921 = vmatpush1.msra.mxu0 0.0
    %922 = vmatprep.subr.mxu0 0.0
    %923 = vmatpush1.msra.mxu0 0.0
    %924 = vmatprep.subr.mxu0 0.0
    %925 = vmatpush1.msra.mxu0 0.0
    %926 = vmatprep.mubr.f32.mxu0 0.0
    %927 = vmatmul.mubr.f32.gmra.mrb[0].mxu0 %v860
    %v928 = vpop.f32.mrb[0].mxu0
    %v929 = vadd.f32 0.0, %v928
    %v930 = vpop.f32.mrb[0].mxu0
    %931 = vdwg.mxu0
    %v932 = vadd.f32 %v157, %v929
    %v933 = vxor.u32 %v932, 2147483648
    %v934 = vmul.f32 %v933, 1.442695
    %v935 = vpow.pop %v934
    %v936 = vadd.f32 %v935, 1.0
    %v937 = vrcp.pop %v936
    %v938 = vmul.f32 1.0, %v937
    %v939 = vtanh.pop %v932
    %v940 = vmul.f32 %v938, %v850
    %942 = vrot.lane.b32.xlu0 %v939, 64
    %v943 = vpop.permute.xlu0 %942
    %v945 = vmul.f32 %v938, %v943
    %947 = vrot.lane.b32.xlu0 %v945, 32
    %v948 = vpop.permute.xlu0 %947
    %v950 = vadd.f32 %v940, %v948
    %v951 = vtanh.pop %v950
    %953 = vrot.lane.b32.xlu0 %v951, 64
    %v954 = vpop.permute.xlu0 %953
    %v956 = vmul.f32 %v938, %v954
    %s957 = scalar_lea.vmem %s1, 14
    %v958 = vld [vmem:[%s957] sm:$0x3]
    %960 = vset.pattern.permute.xlu0 0
    %961 = vperm.xlu0 %960, %v958
    %v962 = vpop.permute.xlu0 %961
    %v965 = vlaneseq
    %v966 = vshrl.u32 %v965, 7
    %v967 = vsub.s32 0, %v966
    %v968 = vrot.slane %v72, %v967
    %v970 = vmul.f32 %v962, %v968
    %972 = vrot.lane.b32.xlu0 %v956, 32
    %v973 = vpop.permute.xlu0 %972
    %v974 = vsel %vm158, %v973, 0
    %976 = vmatprep.subr.mxu0 0.0
    %977 = vmatpush1.msra.mxu0 %v73
    %978 = vmatprep.subr.mxu0 0.0
    %979 = vmatpush1.msra.mxu0 %v74
    %980 = vmatprep.subr.mxu0 0.0
    %981 = vmatpush1.msra.mxu0 %v75
    %982 = vmatprep.subr.mxu0 0.0
    %983 = vmatpush1.msra.mxu0 %v76
    %984 = vmatprep.subr.mxu0 0.0
    %985 = vmatpush1.msra.mxu0 0.0
    %986 = vmatprep.subr.mxu0 0.0
    %987 = vmatpush1.msra.mxu0 0.0
    %988 = vmatprep.subr.mxu0 0.0
    %989 = vmatpush1.msra.mxu0 0.0
    %990 = vmatprep.subr.mxu0 0.0
    %991 = vmatpush1.msra.mxu0 0.0
    %992 = vmatprep.subr.mxu0 0.0
    %993 = vmatpush1.msra.mxu0 0.0
    %994 = vmatprep.subr.mxu0 0.0
    %995 = vmatpush1.msra.mxu0 0.0
    %996 = vmatprep.subr.mxu0 0.0
    %997 = vmatpush1.msra.mxu0 0.0
    %998 = vmatprep.subr.mxu0 0.0
    %999 = vmatpush1.msra.mxu0 0.0
    %1000 = vmatprep.subr.mxu0 0.0
    %1001 = vmatpush1.msra.mxu0 0.0
    %1002 = vmatprep.subr.mxu0 0.0
    %1003 = vmatpush1.msra.mxu0 0.0
    %1004 = vmatprep.subr.mxu0 0.0
    %1005 = vmatpush1.msra.mxu0 0.0
    %1006 = vmatprep.subr.mxu0 0.0
    %1007 = vmatpush1.msra.mxu0 0.0
    %1008 = vmatprep.subr.mxu0 0.0
    %1009 = vmatpush1.msra.mxu0 0.0
    %1010 = vmatprep.subr.mxu0 0.0
    %1011 = vmatpush1.msra.mxu0 0.0
    %1012 = vmatprep.subr.mxu0 0.0
    %1013 = vmatpush1.msra.mxu0 0.0
    %1014 = vmatprep.subr.mxu0 0.0
    %1015 = vmatpush1.msra.mxu0 0.0
    %1016 = vmatprep.subr.mxu0 0.0
    %1017 = vmatpush1.msra.mxu0 0.0
    %1018 = vmatprep.subr.mxu0 0.0
    %1019 = vmatpush1.msra.mxu0 0.0
    %1020 = vmatprep.subr.mxu0 0.0
    %1021 = vmatpush1.msra.mxu0 0.0
    %1022 = vmatprep.subr.mxu0 0.0
    %1023 = vmatpush1.msra.mxu0 0.0
    %1024 = vmatprep.subr.mxu0 0.0
    %1025 = vmatpush1.msra.mxu0 0.0
    %1026 = vmatprep.subr.mxu0 0.0
    %1027 = vmatpush1.msra.mxu0 0.0
    %1028 = vmatprep.subr.mxu0 0.0
    %1029 = vmatpush1.msra.mxu0 0.0
    %1030 = vmatprep.subr.mxu0 0.0
    %1031 = vmatpush1.msra.mxu0 0.0
    %1032 = vmatprep.subr.mxu0 0.0
    %1033 = vmatpush1.msra.mxu0 0.0
    %1034 = vmatprep.subr.mxu0 0.0
    %1035 = vmatpush1.msra.mxu0 0.0
    %1036 = vmatprep.subr.mxu0 0.0
    %1037 = vmatpush1.msra.mxu0 0.0
    %1038 = vmatprep.subr.mxu0 0.0
    %1039 = vmatpush1.msra.mxu0 0.0
    %1040 = vmatprep.mubr.f32.mxu0 0.0
    %1041 = vmatmul.mubr.f32.gmra.mrb[0].mxu0 %v974
    %v1042 = vpop.f32.mrb[0].mxu0
    %v1043 = vadd.f32 0.0, %v1042
    %v1044 = vpop.f32.mrb[0].mxu0
    %1045 = vdwg.mxu0
    %v1046 = vadd.f32 %v970, %v1043
    %v1048 = vlaneseq
    %v1049 = vshrl.u32 %v1048, 7
    %v1050 = vsub.s32 0, %v1049
    %v1051 = vrot.slane %v77, %v1050
    %v1053 = vadd.f32 %v1046, %v1051
    %v1054 = vxor.u32 %v1053, 2147483648
    %v1055 = vmul.f32 %v1054, 1.442695
    %v1056 = vpow.pop %v1055
    %v1057 = vadd.f32 %v1056, 1.0
    %v1058 = vrcp.pop %v1057
    %v1059 = vmul.f32 1.0, %v1058
    %v1060 = vtanh.pop %v1053
    %v1061 = vmul.f32 %v1059, %v950
    %1063 = vrot.lane.b32.xlu0 %v1060, 64
    %v1064 = vpop.permute.xlu0 %1063
    %v1066 = vmul.f32 %v1059, %v1064
    %1068 = vrot.lane.b32.xlu0 %v1066, 32
    %v1069 = vpop.permute.xlu0 %1068
    %v1071 = vadd.f32 %v1061, %v1069
    %v1072 = vtanh.pop %v1071
    %1074 = vrot.lane.b32.xlu0 %v1072, 64
    %v1075 = vpop.permute.xlu0 %1074
    %v1077 = vmul.f32 %v1059, %v1075
    %v1079 = vlaneseq
    %v1080 = vshrl.u32 %v1079, 7
    %v1081 = vsub.s32 0, %v1080
    %v1082 = vrot.slane %v78, %v1081
    %1083 = vrot.lane.b32.xlu0 %v1082, 96
    %v1084 = vpop.permute.xlu0 %1083
    %v1086 = vmul.f32 %v1077, %v1084
    %1088 = vrot.lane.b32.xlu0 %v1086, 32
    %v1089 = vpop.permute.xlu0 %1088
    %vm1091 = vcmask 254976
    %v1092 = vsel %vm1091, %v1089, 0.0
    %1093 = vadd.xlane.f32.xlu0 %v1092
    %v1094 = vpop.xlane.xlu0 %1093
    %v1096 = vlaneseq
    %v1097 = vshrl.u32 %v1096, 7
    %v1098 = vsub.s32 0, %v1097
    %v1099 = vrot.slane %v79, %v1098
    %v1101 = vadd.f32 %v1094, %v1099
    %s1102 = sld [smem:[#allocation3]]
    %v1103 = vld [vmem:[%s2] sm:$0x3]
    %v1104 = vstv %s1102
    %v1105 = vmul.f32 %v1104, %v1103
    %s1106 = ssub.f32 1.0, %s1102
    %v1107 = vstv %s1106
    %v1108 = vmul.f32 %v1107, %v1101
    %v1109 = vadd.f32 %v1105, %v1108
    %1111 = vset.pattern.permute.xlu0 0
    %1112 = vperm.xlu0 %1111, %v1109
    %v1113 = vpop.permute.xlu0 %1112
    %v1115 = vmul.f32 %v1113, %v968
    %1117 = vrot.lane.b32.xlu0 %v1077, 32
    %v1118 = vpop.permute.xlu0 %1117
    %v1119 = vsel %vm158, %v1118, 0
    %1121 = vmatprep.subr.mxu0 0.0
    %1122 = vmatpush1.msra.mxu0 %v73
    %1123 = vmatprep.subr.mxu0 0.0
    %1124 = vmatpush1.msra.mxu0 %v74
    %1125 = vmatprep.subr.mxu0 0.0
    %1126 = vmatpush1.msra.mxu0 %v75
    %1127 = vmatprep.subr.mxu0 0.0
    %1128 = vmatpush1.msra.mxu0 %v76
    %1129 = vmatprep.subr.mxu0 0.0
    %1130 = vmatpush1.msra.mxu0 0.0
    %1131 = vmatprep.subr.mxu0 0.0
    %1132 = vmatpush1.msra.mxu0 0.0
    %1133 = vmatprep.subr.mxu0 0.0
    %1134 = vmatpush1.msra.mxu0 0.0
    %1135 = vmatprep.subr.mxu0 0.0
    %1136 = vmatpush1.msra.mxu0 0.0
    %1137 = vmatprep.subr.mxu0 0.0
    %1138 = vmatpush1.msra.mxu0 0.0
    %1139 = vmatprep.subr.mxu0 0.0
    %1140 = vmatpush1.msra.mxu0 0.0
    %1141 = vmatprep.subr.mxu0 0.0
    %1142 = vmatpush1.msra.mxu0 0.0
    %1143 = vmatprep.subr.mxu0 0.0
    %1144 = vmatpush1.msra.mxu0 0.0
    %1145 = vmatprep.subr.mxu0 0.0
    %1146 = vmatpush1.msra.mxu0 0.0
    %1147 = vmatprep.subr.mxu0 0.0
    %1148 = vmatpush1.msra.mxu0 0.0
    %1149 = vmatprep.subr.mxu0 0.0
    %1150 = vmatpush1.msra.mxu0 0.0
    %1151 = vmatprep.subr.mxu0 0.0
    %1152 = vmatpush1.msra.mxu0 0.0
    %1153 = vmatprep.subr.mxu0 0.0
    %1154 = vmatpush1.msra.mxu0 0.0
    %1155 = vmatprep.subr.mxu0 0.0
    %1156 = vmatpush1.msra.mxu0 0.0
    %1157 = vmatprep.subr.mxu0 0.0
    %1158 = vmatpush1.msra.mxu0 0.0
    %1159 = vmatprep.subr.mxu0 0.0
    %1160 = vmatpush1.msra.mxu0 0.0
    %1161 = vmatprep.subr.mxu0 0.0
    %1162 = vmatpush1.msra.mxu0 0.0
    %1163 = vmatprep.subr.mxu0 0.0
    %1164 = vmatpush1.msra.mxu0 0.0
    %1165 = vmatprep.subr.mxu0 0.0
    %1166 = vmatpush1.msra.mxu0 0.0
    %1167 = vmatprep.subr.mxu0 0.0
    %1168 = vmatpush1.msra.mxu0 0.0
    %1169 = vmatprep.subr.mxu0 0.0
    %1170 = vmatpush1.msra.mxu0 0.0
    %1171 = vmatprep.subr.mxu0 0.0
    %1172 = vmatpush1.msra.mxu0 0.0
    %1173 = vmatprep.subr.mxu0 0.0
    %1174 = vmatpush1.msra.mxu0 0.0
    %1175 = vmatprep.subr.mxu0 0.0
    %1176 = vmatpush1.msra.mxu0 0.0
    %1177 = vmatprep.subr.mxu0 0.0
    %1178 = vmatpush1.msra.mxu0 0.0
    %1179 = vmatprep.subr.mxu0 0.0
    %1180 = vmatpush1.msra.mxu0 0.0
    %1181 = vmatprep.subr.mxu0 0.0
    %1182 = vmatpush1.msra.mxu0 0.0
    %1183 = vmatprep.subr.mxu0 0.0
    %1184 = vmatpush1.msra.mxu0 0.0
    %1185 = vmatprep.mubr.f32.mxu0 0.0
    %1186 = vmatmul.mubr.f32.gmra.mrb[0].mxu0 %v1119
    %v1187 = vpop.f32.mrb[0].mxu0
    %v1188 = vadd.f32 0.0, %v1187
    %v1189 = vpop.f32.mrb[0].mxu0
    %1190 = vdwg.mxu0
    %v1191 = vadd.f32 %v1115, %v1188
    %v1192 = vadd.f32 %v1191, %v1051
    %v1193 = vxor.u32 %v1192, 2147483648
    %v1194 = vmul.f32 %v1193, 1.442695
    %v1195 = vpow.pop %v1194
    %v1196 = vadd.f32 %v1195, 1.0
    %v1197 = vrcp.pop %v1196
    %v1198 = vmul.f32 1.0, %v1197
    %v1199 = vtanh.pop %v1192
    %v1200 = vmul.f32 %v1198, %v1071
    %1202 = vrot.lane.b32.xlu0 %v1199, 64
    %v1203 = vpop.permute.xlu0 %1202
    %v1205 = vmul.f32 %v1198, %v1203
    %1207 = vrot.lane.b32.xlu0 %v1205, 32
    %v1208 = vpop.permute.xlu0 %1207
    %v1210 = vadd.f32 %v1200, %v1208
    %v1211 = vtanh.pop %v1210
    %1213 = vrot.lane.b32.xlu0 %v1211, 64
    %v1214 = vpop.permute.xlu0 %1213
    %v1216 = vmul.f32 %v1198, %v1214
    %v1217 = vmul.f32 %v1216, %v1084
    %1219 = vrot.lane.b32.xlu0 %v1217, 32
    %v1220 = vpop.permute.xlu0 %1219
    %v1222 = vsel %vm1091, %v1220, 0.0
    %1223 = vadd.xlane.f32.xlu0 %v1222
    %v1224 = vpop.xlane.xlu0 %1223
    %v1225 = vadd.f32 %v1224, %v1099
    %s1226 = sld [smem:[#allocation3 + $0x1]]
    %s1227 = scalar_lea.vmem %s2, 2
    %v1228 = vld [vmem:[%s1227] sm:$0x3]
    %v1229 = vstv %s1226
    %v1230 = vmul.f32 %v1229, %v1228
    %s1231 = ssub.f32 1.0, %s1226
    %v1232 = vstv %s1231
    %v1233 = vmul.f32 %v1232, %v1225
    %v1234 = vadd.f32 %v1230, %v1233
    %1236 = vset.pattern.permute.xlu0 0
    %1237 = vperm.xlu0 %1236, %v1234
    %v1238 = vpop.permute.xlu0 %1237
    %v1240 = vmul.f32 %v1238, %v968
    %1242 = vrot.lane.b32.xlu0 %v1216, 32
    %v1243 = vpop.permute.xlu0 %1242
    %v1244 = vsel %vm158, %v1243, 0
    %1246 = vmatprep.subr.mxu0 0.0
    %1247 = vmatpush1.msra.mxu0 %v73
    %1248 = vmatprep.subr.mxu0 0.0
    %1249 = vmatpush1.msra.mxu0 %v74
    %1250 = vmatprep.subr.mxu0 0.0
    %1251 = vmatpush1.msra.mxu0 %v75
    %1252 = vmatprep.subr.mxu0 0.0
    %1253 = vmatpush1.msra.mxu0 %v76
    %1254 = vmatprep.subr.mxu0 0.0
    %1255 = vmatpush1.msra.mxu0 0.0
    %1256 = vmatprep.subr.mxu0 0.0
    %1257 = vmatpush1.msra.mxu0 0.0
    %1258 = vmatprep.subr.mxu0 0.0
    %1259 = vmatpush1.msra.mxu0 0.0
    %1260 = vmatprep.subr.mxu0 0.0
    %1261 = vmatpush1.msra.mxu0 0.0
    %1262 = vmatprep.subr.mxu0 0.0
    %1263 = vmatpush1.msra.mxu0 0.0
    %1264 = vmatprep.subr.mxu0 0.0
    %1265 = vmatpush1.msra.mxu0 0.0
    %1266 = vmatprep.subr.mxu0 0.0
    %1267 = vmatpush1.msra.mxu0 0.0
    %1268 = vmatprep.subr.mxu0 0.0
    %1269 = vmatpush1.msra.mxu0 0.0
    %1270 = vmatprep.subr.mxu0 0.0
    %1271 = vmatpush1.msra.mxu0 0.0
    %1272 = vmatprep.subr.mxu0 0.0
    %1273 = vmatpush1.msra.mxu0 0.0
    %1274 = vmatprep.subr.mxu0 0.0
    %1275 = vmatpush1.msra.mxu0 0.0
    %1276 = vmatprep.subr.mxu0 0.0
    %1277 = vmatpush1.msra.mxu0 0.0
    %1278 = vmatprep.subr.mxu0 0.0
    %1279 = vmatpush1.msra.mxu0 0.0
    %1280 = vmatprep.subr.mxu0 0.0
    %1281 = vmatpush1.msra.mxu0 0.0
    %1282 = vmatprep.subr.mxu0 0.0
    %1283 = vmatpush1.msra.mxu0 0.0
    %1284 = vmatprep.subr.mxu0 0.0
    %1285 = vmatpush1.msra.mxu0 0.0
    %1286 = vmatprep.subr.mxu0 0.0
    %1287 = vmatpush1.msra.mxu0 0.0
    %1288 = vmatprep.subr.mxu0 0.0
    %1289 = vmatpush1.msra.mxu0 0.0
    %1290 = vmatprep.subr.mxu0 0.0
    %1291 = vmatpush1.msra.mxu0 0.0
    %1292 = vmatprep.subr.mxu0 0.0
    %1293 = vmatpush1.msra.mxu0 0.0
    %1294 = vmatprep.subr.mxu0 0.0
    %1295 = vmatpush1.msra.mxu0 0.0
    %1296 = vmatprep.subr.mxu0 0.0
    %1297 = vmatpush1.msra.mxu0 0.0
    %1298 = vmatprep.subr.mxu0 0.0
    %1299 = vmatpush1.msra.mxu0 0.0
    %1300 = vmatprep.subr.mxu0 0.0
    %1301 = vmatpush1.msra.mxu0 0.0
    %1302 = vmatprep.subr.mxu0 0.0
    %1303 = vmatpush1.msra.mxu0 0.0
    %1304 = vmatprep.subr.mxu0 0.0
    %1305 = vmatpush1.msra.mxu0 0.0
    %1306 = vmatprep.subr.mxu0 0.0
    %1307 = vmatpush1.msra.mxu0 0.0
    %1308 = vmatprep.subr.mxu0 0.0
    %1309 = vmatpush1.msra.mxu0 0.0
    %1310 = vmatprep.mubr.f32.mxu0 0.0
    %1311 = vmatmul.mubr.f32.gmra.mrb[0].mxu0 %v1244
    %v1312 = vpop.f32.mrb[0].mxu0
    %v1313 = vadd.f32 0.0, %v1312
    %v1314 = vpop.f32.mrb[0].mxu0
    %1315 = vdwg.mxu0
    %v1316 = vadd.f32 %v1240, %v1313
    %v1317 = vadd.f32 %v1316, %v1051
    %v1318 = vxor.u32 %v1317, 2147483648
    %v1319 = vmul.f32 %v1318, 1.442695
    %v1320 = vpow.pop %v1319
    %v1321 = vadd.f32 %v1320, 1.0
    %v1322 = vrcp.pop %v1321
    %v1323 = vmul.f32 1.0, %v1322
    %v1324 = vtanh.pop %v1317
    %v1325 = vmul.f32 %v1323, %v1210
    %1327 = vrot.lane.b32.xlu0 %v1324, 64
    %v1328 = vpop.permute.xlu0 %1327
    %v1330 = vmul.f32 %v1323, %v1328
    %1332 = vrot.lane.b32.xlu0 %v1330, 32
    %v1333 = vpop.permute.xlu0 %1332
    %v1335 = vadd.f32 %v1325, %v1333
    %v1336 = vtanh.pop %v1335
    %1338 = vrot.lane.b32.xlu0 %v1336, 64
    %v1339 = vpop.permute.xlu0 %1338
    %v1341 = vmul.f32 %v1323, %v1339
    %v1342 = vmul.f32 %v1341, %v1084
    %1344 = vrot.lane.b32.xlu0 %v1342, 32
    %v1345 = vpop.permute.xlu0 %1344
    %v1347 = vsel %vm1091, %v1345, 0.0
    %1348 = vadd.xlane.f32.xlu0 %v1347
    %v1349 = vpop.xlane.xlu0 %1348
    %v1350 = vadd.f32 %v1349, %v1099
    %s1351 = sld [smem:[#allocation3 + $0x2]]
    %s1352 = scalar_lea.vmem %s2, 4
    %v1353 = vld [vmem:[%s1352] sm:$0x3]
    %v1354 = vstv %s1351
    %v1355 = vmul.f32 %v1354, %v1353
    %s1356 = ssub.f32 1.0, %s1351
    %v1357 = vstv %s1356
    %v1358 = vmul.f32 %v1357, %v1350
    %v1359 = vadd.f32 %v1355, %v1358
    %1361 = vset.pattern.permute.xlu0 0
    %1362 = vperm.xlu0 %1361, %v1359
    %v1363 = vpop.permute.xlu0 %1362
    %v1365 = vmul.f32 %v1363, %v968
    %1367 = vrot.lane.b32.xlu0 %v1341, 32
    %v1368 = vpop.permute.xlu0 %1367
    %v1369 = vsel %vm158, %v1368, 0
    %1371 = vmatprep.subr.mxu0 0.0
    %1372 = vmatpush1.msra.mxu0 %v73
    %1373 = vmatprep.subr.mxu0 0.0
    %1374 = vmatpush1.msra.mxu0 %v74
    %1375 = vmatprep.subr.mxu0 0.0
    %1376 = vmatpush1.msra.mxu0 %v75
    %1377 = vmatprep.subr.mxu0 0.0
    %1378 = vmatpush1.msra.mxu0 %v76
    %1379 = vmatprep.subr.mxu0 0.0
    %1380 = vmatpush1.msra.mxu0 0.0
    %1381 = vmatprep.subr.mxu0 0.0
    %1382 = vmatpush1.msra.mxu0 0.0
    %1383 = vmatprep.subr.mxu0 0.0
    %1384 = vmatpush1.msra.mxu0 0.0
    %1385 = vmatprep.subr.mxu0 0.0
    %1386 = vmatpush1.msra.mxu0 0.0
    %1387 = vmatprep.subr.mxu0 0.0
    %1388 = vmatpush1.msra.mxu0 0.0
    %1389 = vmatprep.subr.mxu0 0.0
    %1390 = vmatpush1.msra.mxu0 0.0
    %1391 = vmatprep.subr.mxu0 0.0
    %1392 = vmatpush1.msra.mxu0 0.0
    %1393 = vmatprep.subr.mxu0 0.0
    %1394 = vmatpush1.msra.mxu0 0.0
    %1395 = vmatprep.subr.mxu0 0.0
    %1396 = vmatpush1.msra.mxu0 0.0
    %1397 = vmatprep.subr.mxu0 0.0
    %1398 = vmatpush1.msra.mxu0 0.0
    %1399 = vmatprep.subr.mxu0 0.0
    %1400 = vmatpush1.msra.mxu0 0.0
    %1401 = vmatprep.subr.mxu0 0.0
    %1402 = vmatpush1.msra.mxu0 0.0
    %1403 = vmatprep.subr.mxu0 0.0
    %1404 = vmatpush1.msra.mxu0 0.0
    %1405 = vmatprep.subr.mxu0 0.0
    %1406 = vmatpush1.msra.mxu0 0.0
    %1407 = vmatprep.subr.mxu0 0.0
    %1408 = vmatpush1.msra.mxu0 0.0
    %1409 = vmatprep.subr.mxu0 0.0
    %1410 = vmatpush1.msra.mxu0 0.0
    %1411 = vmatprep.subr.mxu0 0.0
    %1412 = vmatpush1.msra.mxu0 0.0
    %1413 = vmatprep.subr.mxu0 0.0
    %1414 = vmatpush1.msra.mxu0 0.0
    %1415 = vmatprep.subr.mxu0 0.0
    %1416 = vmatpush1.msra.mxu0 0.0
    %1417 = vmatprep.subr.mxu0 0.0
    %1418 = vmatpush1.msra.mxu0 0.0
    %1419 = vmatprep.subr.mxu0 0.0
    %1420 = vmatpush1.msra.mxu0 0.0
    %1421 = vmatprep.subr.mxu0 0.0
    %1422 = vmatpush1.msra.mxu0 0.0
    %1423 = vmatprep.subr.mxu0 0.0
    %1424 = vmatpush1.msra.mxu0 0.0
    %1425 = vmatprep.subr.mxu0 0.0
    %1426 = vmatpush1.msra.mxu0 0.0
    %1427 = vmatprep.subr.mxu0 0.0
    %1428 = vmatpush1.msra.mxu0 0.0
    %1429 = vmatprep.subr.mxu0 0.0
    %1430 = vmatpush1.msra.mxu0 0.0
    %1431 = vmatprep.subr.mxu0 0.0
    %1432 = vmatpush1.msra.mxu0 0.0
    %1433 = vmatprep.subr.mxu0 0.0
    %1434 = vmatpush1.msra.mxu0 0.0
    %1435 = vmatprep.mubr.f32.mxu0 0.0
    %1436 = vmatmul.mubr.f32.gmra.mrb[0].mxu0 %v1369
    %v1437 = vpop.f32.mrb[0].mxu0
    %v1438 = vadd.f32 0.0, %v1437
    %v1439 = vpop.f32.mrb[0].mxu0
    %1440 = vdwg.mxu0
    %v1441 = vadd.f32 %v1365, %v1438
    %v1442 = vadd.f32 %v1441, %v1051
    %v1443 = vxor.u32 %v1442, 2147483648
    %v1444 = vmul.f32 %v1443, 1.442695
    %v1445 = vpow.pop %v1444
    %v1446 = vadd.f32 %v1445, 1.0
    %v1447 = vrcp.pop %v1446
    %v1448 = vmul.f32 1.0, %v1447
    %v1449 = vtanh.pop %v1442
    %v1450 = vmul.f32 %v1448, %v1335
    %1452 = vrot.lane.b32.xlu0 %v1449, 64
    %v1453 = vpop.permute.xlu0 %1452
    %v1455 = vmul.f32 %v1448, %v1453
    %1457 = vrot.lane.b32.xlu0 %v1455, 32
    %v1458 = vpop.permute.xlu0 %1457
    %v1460 = vadd.f32 %v1450, %v1458
    %v1461 = vtanh.pop %v1460
    %1463 = vrot.lane.b32.xlu0 %v1461, 64
    %v1464 = vpop.permute.xlu0 %1463
    %v1466 = vmul.f32 %v1448, %v1464
    %v1467 = vmul.f32 %v1466, %v1084
    %1469 = vrot.lane.b32.xlu0 %v1467, 32
    %v1470 = vpop.permute.xlu0 %1469
    %v1472 = vsel %vm1091, %v1470, 0.0
    %1473 = vadd.xlane.f32.xlu0 %v1472
    %v1474 = vpop.xlane.xlu0 %1473
    %v1475 = vadd.f32 %v1474, %v1099
    %1477 = vrot.lane.b32.xlu0 %v1225, 1
    %v1478 = vpop.permute.xlu0 %1477
    %1481 = vrot.lane.b32.xlu0 %v1350, 2
    %v1482 = vpop.permute.xlu0 %1481
    %1485 = vrot.lane.b32.xlu0 %v1475, 3
    %v1486 = vpop.permute.xlu0 %1485
    %vm1488 = vcmask 7168
    %v1489 = vsel %vm1488, %v1101, %v1478
    %vm1490 = vcmask 15360
    %v1491 = vsel %vm1490, %v1489, %v1482
    %vm1492 = vcmask 23552
    %v1493 = vsel %vm1492, %v1491, %v1486
    %vm1494 = vcmask 25600
    %1495 = vst.msk [vmem:[#allocation8] sm:$0x3] %vm1494, %v1493
    // Predicated region
    $region54: #{tpu_custom_call.1} parent=1 // pred_check
      _
    $region55: #{tpu_custom_call.1} parent=1 // pred_check_branch
      %1497 = sbr.rel (0) target = $region57
    $region56: #{tpu_custom_call.1} parent=1 // pred_region
      %s1499 = ssub.s32 32, 32
      %1500 = vsyncadd [#allocation5], %s1499
      %s1502 = sshll.u32 [#allocation8], 4
      %s1503 = int_to_ptr.vmem [resolvable:$true] %s1502
      %1505 = dma.vmem_to_hbm [thread:$0]  %s1503, 32, %s11, [#allocation5]
    $region57: #{tpu_custom_call.1} parent=1 // pred_fallthru
      _
    // Predicated region
    $region58: #{tpu_custom_call.1} parent=1 // pred_check
      _
    $region59: #{tpu_custom_call.1} parent=1 // pred_check_branch
      %1507 = sbr.rel (0) target = $region61
    $region60: #{tpu_custom_call.1} parent=1 // pred_region
      %1508 = dma.done [#allocation5], 32
    $region61: #{tpu_custom_call.1} parent=1 // pred_fallthru
      _
    %1509 = vsyncpa [#allocation4], 1
    %1510 = vsyncpa [#allocation5], 1
    %1511 = vsyncpa [#allocation6], 1

</llo_original>
